<compile_context>
chip_gen: v7x
topology: tpu7x:2x2x1
jax: 0.10.0
libtpu: 0.0.40
codegen_flags: <defaults>
</compile_context>

<pallas_src>
import functools

import jax
import jax.numpy as jnp
from jax.experimental import pallas as pl
from jax.experimental.pallas import tpu as pltpu


# ----------------------------------------------------------------------------
# Fused kernel: `nb` batch elements per grid step.
# ----------------------------------------------------------------------------
def _expanding_stack_kernel(
    x_ref,       # (nb, Cp,  H*W)      bf16  low-res decoder input, dense flat
    skip_ref,    # (nb, Cp,  M)        bf16  skip, pre-padded flat buffer layout
    a_up_ref,    # (H*W, M)            bf16  bilinear-x2 upsample fused with pad-embed
    mask_ref,    # (1, L)              bf16  0/1 halo mask over the (Hp, Wp) acc grid
    w1u_ref,     # (Cm, 9*Cp)          bf16  conv1 weights, upsample-path channels
    w1s_ref,     # (Cm, 9*Cp)          bf16  conv1 weights, skip-path channels
    b1_ref,      # (Cm, 1)             f32
    w2_ref,      # (Co, 9*Cm)          bf16  conv2 weights
    b2_ref,      # (Co, 1)             f32
    o_ref,       # (nb, Co, L)         f32   full (Hp,Wp) grid; wrapper slices interior
    *, nb, Wp, L,
):
  # Flat-index shift of tap (dy, dx) inside the zero-margined flat buffer.
  shifts = [dy * Wp + dx for dy in range(3) for dx in range(3)]

  def im2col(bufs):
    # bufs: list of nb (C, M) bf16 flat buffers.
    # Each 3x3 tap is a contiguous lane window; nb elements go side-by-side in
    # lanes, the 9 taps stack along (tile-aligned) sublanes -> (9*C, nb*L).
    taps = []
    for s in shifts:
      taps.append(jnp.concatenate([b[:, s:s + L] for b in bufs], axis=1))
    return jnp.concatenate(taps, axis=0)

  # ---- conv1 inputs --------------------------------------------------------
  up_bufs, skip_bufs = [], []
  for j in range(nb):
    # Bilinear x2 upsample (align_corners=True) + zero-pad embed: one bf16 dot.
    up = jnp.dot(x_ref[j], a_up_ref[...], preferred_element_type=jnp.float32)
    up_bufs.append(up.astype(jnp.bfloat16))          # (Cp, M)
    skip_bufs.append(skip_ref[j])                    # (Cp, M), already padded

  # ---- conv1 (split into upsample-path + skip-path dots) + bias + ReLU -----
  acc1 = jnp.dot(w1u_ref[...], im2col(up_bufs),
                 preferred_element_type=jnp.float32)
  acc1 = acc1 + jnp.dot(w1s_ref[...], im2col(skip_bufs),
                        preferred_element_type=jnp.float32)
  h1 = jnp.maximum(acc1 + b1_ref[...], 0.0).astype(jnp.bfloat16)  # (Cm, nb*L)

  # ---- re-embed conv1 output with a zero halo: VPU mask + zero-slab concats -
  cm = h1.shape[0]
  zmargin = jnp.zeros((cm, Wp + 1), jnp.bfloat16)
  bufs2 = []
  for j in range(nb):
    h1j = h1[:, j * L:(j + 1) * L] * mask_ref[...]   # zero the halo ring
    bufs2.append(jnp.concatenate([zmargin, h1j, zmargin], axis=1))  # (Cm, M)

  # ---- conv2 + bias + ReLU -------------------------------------------------
  acc2 = jnp.dot(w2_ref[...], im2col(bufs2),
                 preferred_element_type=jnp.float32)
  h2 = jnp.maximum(acc2 + b2_ref[...], 0.0)          # (Co, nb*L) f32

  for j in range(nb):
    o_ref[j] = h2[:, j * L:(j + 1) * L].astype(o_ref.dtype)


# ----------------------------------------------------------------------------
# Wrapper: prepares padded/bf16 operands and calls the fused kernel.
# ----------------------------------------------------------------------------
def _interp_matrix_x2_align_corners(size_in, size_out):
  """(size_out, size_in) 1-D linear interpolation matrix, align_corners=True."""
  if size_in == 1:
    return jnp.ones((size_out, 1), jnp.float32)
  src = jnp.arange(size_out, dtype=jnp.float32) * (
      (size_in - 1) / (size_out - 1))
  i0 = jnp.clip(jnp.floor(src).astype(jnp.int32), 0, size_in - 1)
  i1 = jnp.minimum(i0 + 1, size_in - 1)
  f = src - i0.astype(jnp.float32)
  return (jax.nn.one_hot(i0, size_in, dtype=jnp.float32) * (1.0 - f)[:, None]
          + jax.nn.one_hot(i1, size_in, dtype=jnp.float32) * f[:, None])


def expanding_stack_forward(x_nchw, x_skip_nchw, params, *, batch_block=1):
  """ExpandingStack.forward (batch_norm=False, pre_activation=False)."""
  N, Cin, H, W = x_nchw.shape
  Ns, Cs, Ho, Wo = x_skip_nchw.shape
  assert (Ns, Cs, Ho, Wo) == (N, Cin, 2 * H, 2 * W)
  Cmid = params["w1"].shape[0]          # == Cin
  Cout = params["w2"].shape[0]
  nb = batch_block
  assert N % nb == 0

  # Channel padding to the bf16 sublane tile -> tile-aligned sublane concats,
  # unmasked output stores.  No-op once channel counts are real (>=16 multiples).
  def rup(c, m=16):
    return ((c + m - 1) // m) * m
  cin_p, cmid_p, cout_p = rup(Cin), rup(Cmid), rup(Cout)

  # Zero-margined flat-buffer geometry: padded image is (Ho+2, Wo+2); an extra
  # (Wp+1) margin at each end makes every 3x3 tap a contiguous lane slice.
  Hp, Wp = Ho + 2, Wo + 2
  L = Hp * Wp                            # conv accumulation domain
  M = L + 2 * (Wp + 1)                   # buffer length incl. margins

  f32, bf16 = jnp.float32, jnp.bfloat16

  # Bilinear x2 (align_corners=True) fused with the pad-embed, as a bf16 matrix.
  # TODO(synk): replace with a separable per-strip upsample at production sizes.
  Rh = _interp_matrix_x2_align_corners(H, Ho)     # (Ho, H)
  Rw = _interp_matrix_x2_align_corners(W, Wo)     # (Wo, W)
  U = jnp.einsum("oh,pw->hwop", Rh, Rw).reshape(H * W, Ho * Wo)
  dest = ((jnp.arange(Ho)[:, None] + 1) * Wp
          + (jnp.arange(Wo)[None, :] + 1) + (Wp + 1)).reshape(-1)
  a_up = jnp.zeros((H * W, M), f32).at[:, dest].set(U).astype(bf16)

  # 0/1 halo mask over the (Hp, Wp) conv-accumulation grid (interior == valid).
  aa = jnp.arange(Hp)[:, None]
  bb = jnp.arange(Wp)[None, :]
  mask = ((aa >= 1) & (aa <= Ho) & (bb >= 1) & (bb <= Wo)).astype(bf16)
  mask = mask.reshape(1, L)

  # Inputs: bf16 at the pallas_call boundary; skip pre-padded into the flat
  # buffer layout in HBM (replaces the old skip @ E matmul).
  def pad_ch(a, c_to):
    pad = [(0, 0)] * a.ndim
    pad[1] = (0, c_to - a.shape[1])
    return jnp.pad(a, pad)

  x2d = pad_ch(x_nchw, cin_p).astype(bf16).reshape(N, cin_p, H * W)
  skip_sp = jnp.pad(pad_ch(x_skip_nchw, cin_p),
                    ((0, 0), (0, 0), (1, 1), (1, 1)))        # (N, Cp, Hp, Wp)
  skip_buf = jnp.pad(skip_sp.reshape(N, cin_p, L),
                     ((0, 0), (0, 0), (Wp + 1, Wp + 1))).astype(bf16)

  # Conv weights as tap-major im2col slabs (bf16), channel-padded.
  def conv_slab(w, c_out_p, c_in_p):
    co, ci = w.shape[0], w.shape[1]
    w = jnp.pad(w, ((0, c_out_p - co), (0, c_in_p - ci), (0, 0), (0, 0)))
    return jnp.transpose(w, (0, 2, 3, 1)).reshape(c_out_p, 9 * c_in_p).astype(bf16)

  w1 = params["w1"]                                   # (Cmid, 2*Cin, 3, 3)
  w1u = conv_slab(w1[:, :Cin], cmid_p, cin_p)         # upsample-path channels
  w1s = conv_slab(w1[:, Cin:], cmid_p, cin_p)         # skip-path channels
  w2s = conv_slab(params["w2"], cout_p, cmid_p)
  b1 = jnp.pad(params["b1"], (0, cmid_p - Cmid)).reshape(cmid_p, 1).astype(f32)
  b2 = jnp.pad(params["b2"], (0, cout_p - Cout)).reshape(cout_p, 1).astype(f32)

  kernel = functools.partial(_expanding_stack_kernel, nb=nb, Wp=Wp, L=L)
  bcast = lambda n: (0, 0)

  out_flat = pl.pallas_call(
      kernel,
      out_shape=jax.ShapeDtypeStruct((N, cout_p, L), x_nchw.dtype),
      grid_spec=pltpu.PrefetchScalarGridSpec(
          num_scalar_prefetch=0,
          grid=(N // nb,),
          in_specs=[
              pl.BlockSpec((nb, cin_p, H * W), lambda n: (n, 0, 0)),
              pl.BlockSpec((nb, cin_p, M), lambda n: (n, 0, 0)),
              pl.BlockSpec((H * W, M), bcast),
              pl.BlockSpec((1, L), bcast),
              pl.BlockSpec((cmid_p, 9 * cin_p), bcast),
              pl.BlockSpec((cmid_p, 9 * cin_p), bcast),
              pl.BlockSpec((cmid_p, 1), bcast),
              pl.BlockSpec((cout_p, 9 * cmid_p), bcast),
              pl.BlockSpec((cout_p, 1), bcast),
          ],
          out_specs=pl.BlockSpec((nb, cout_p, L), lambda n: (n, 0, 0)),
      ),
      # Batch groups are independent: shard across TensorCores on v7x.
      compiler_params=pltpu.CompilerParams(
          dimension_semantics=("parallel",),
          vmem_limit_bytes=32 * 1024 * 1024),
  )(x2d, skip_buf, a_up, mask, w1u, w1s, b1, w2s, b2)

  # Interior extraction + channel unpad: a cheap HBM-side slice (replaces the
  # old h2 @ G matmul).  Result is NCHW.
  out = out_flat.reshape(N, cout_p, Hp, Wp)[:, :Cout, 1:1 + Ho, 1:1 + Wo]
  return out


# ----------------------------------------------------------------------------
# Pure-JAX reference (loose numerical sanity check) and demo.
# ----------------------------------------------------------------------------
def _reference_forward(x, x_skip, params):
  N, Cin, H, W = x.shape
  Ho, Wo = 2 * H, 2 * W
  Rh = _interp_matrix_x2_align_corners(H, Ho)
  Rw = _interp_matrix_x2_align_corners(W, Wo)
  up = jnp.einsum("oh,nchw,pw->ncop", Rh, x, Rw)
  h = jnp.concatenate([up, x_skip], axis=1)

  def conv_relu(t, w, b):
    y = jax.lax.conv_general_dilated(
        t, w, window_strides=(1, 1), padding="SAME",
        dimension_numbers=("NCHW", "OIHW", "NCHW"))
    return jnp.maximum(y + b[None, :, None, None], 0.0)

  return conv_relu(conv_relu(h, params["w1"], params["b1"]),
                   params["w2"], params["b2"])


def init_params(key, in_channels, out_channels):
  k1, k2, k3, k4 = jax.random.split(key, 4)
  return {
      "w1": 0.1 * jax.random.normal(
          k1, (in_channels, 2 * in_channels, 3, 3), jnp.float32),
      "b1": 0.1 * jax.random.normal(k2, (in_channels,), jnp.float32),
      "w2": 0.1 * jax.random.normal(
          k3, (out_channels, in_channels, 3, 3), jnp.float32),
      "b2": 0.1 * jax.random.normal(k4, (out_channels,), jnp.float32),
  }


if __name__ == "__main__":
  key = jax.random.PRNGKey(0)
  k_x, k_skip, k_p = jax.random.split(key, 3)

  # N=4 with batch_block=2 exercises the multi-element-per-step path while
  # keeping the parallel grid extent at 2 (both v7x TensorCores busy).
  N, Cin, Cout = 4, 4, 4
  H = W = 8      # decoder input spatial; upsampled to 16x16 to match the skip

  x = jax.random.normal(k_x, (N, Cin, H, W), jnp.float32)             # NCHW
  x_skip = jax.random.normal(k_skip, (N, Cin, 2 * H, 2 * W), jnp.float32)
  params = init_params(k_p, Cin, Cout)

  fwd = jax.jit(expanding_stack_forward, static_argnames=("batch_block",))
  out = fwd(x, x_skip, params, batch_block=2)
  jax.block_until_ready(out)
  assert out.shape == (N, Cout, 2 * H, 2 * W), out.shape

  # Loose tolerance: inputs / weights / upsample coefficients are bf16 on the
  # MXU path (f32 accumulate).
  ref = _reference_forward(x, x_skip, params)
  assert jnp.allclose(out, ref, atol=5e-2, rtol=5e-2), (
      float(jnp.max(jnp.abs(out - ref))))

  print("KERNEL_OK")
</pallas_src>

<mosaic_0001>
module attributes {stable_mosaic.version = 11 : i64} {
  func.func @_expanding_stack_kernel(%arg0: i32, %arg1: memref<2x16x64xbf16, #tpu.memory_space<vmem>>, %arg2: memref<2x16x362xbf16, #tpu.memory_space<vmem>>, %arg3: memref<64x362xbf16, #tpu.memory_space<vmem>>, %arg4: memref<1x324xbf16, #tpu.memory_space<vmem>>, %arg5: memref<16x144xbf16, #tpu.memory_space<vmem>>, %arg6: memref<16x144xbf16, #tpu.memory_space<vmem>>, %arg7: memref<16x1xf32, #tpu.memory_space<vmem>>, %arg8: memref<16x144xbf16, #tpu.memory_space<vmem>>, %arg9: memref<16x1xf32, #tpu.memory_space<vmem>>, %arg10: memref<2x16x324xf32, #tpu.memory_space<vmem>>) attributes {dimension_semantics = [#tpu.dimension_semantics<parallel>], iteration_bounds = array<i64: 2>, scalar_prefetch = 0 : i64, scratch_operands = 0 : i64, tpu.core_type = #tpu.core_type<tc>, window_params = [{transform_indices = @transform_0, window_bounds = array<i64: 2, 16, 64>}, {transform_indices = @transform_1, window_bounds = array<i64: 2, 16, 362>}, {pipeline_mode = #tpu.pipeline_mode<synchronous>, transform_indices = @transform_2, window_bounds = array<i64: 64, 362>}, {pipeline_mode = #tpu.pipeline_mode<synchronous>, transform_indices = @transform_3, window_bounds = array<i64: 1, 324>}, {pipeline_mode = #tpu.pipeline_mode<synchronous>, transform_indices = @transform_4, window_bounds = array<i64: 16, 144>}, {pipeline_mode = #tpu.pipeline_mode<synchronous>, transform_indices = @transform_5, window_bounds = array<i64: 16, 144>}, {pipeline_mode = #tpu.pipeline_mode<synchronous>, transform_indices = @transform_6, window_bounds = array<i64: 16, 1>}, {pipeline_mode = #tpu.pipeline_mode<synchronous>, transform_indices = @transform_7, window_bounds = array<i64: 16, 144>}, {pipeline_mode = #tpu.pipeline_mode<synchronous>, transform_indices = @transform_8, window_bounds = array<i64: 16, 1>}, {transform_indices = @transform_9, window_bounds = array<i64: 2, 16, 324>}]} {
    %c0 = arith.constant 0 : index
    %c0_0 = arith.constant 0 : index
    %c0_1 = arith.constant 0 : index
    %0 = vector.load %arg1[%c0, %c0_0, %c0_1] : memref<2x16x64xbf16, #tpu.memory_space<vmem>>, vector<1x16x64xbf16>
    %1 = vector.shape_cast %0 : vector<1x16x64xbf16> to vector<16x64xbf16>
    %c0_2 = arith.constant 0 : index
    %c0_3 = arith.constant 0 : index
    %2 = vector.load %arg3[%c0_2, %c0_3] : memref<64x362xbf16, #tpu.memory_space<vmem>>, vector<64x362xbf16>
    %cst = arith.constant dense<0.000000e+00> : vector<16x362xf32>
    %3 = tpu.matmul %1, %2, %cst {dimension_numbers = #tpu.dot_dimension_numbers<[1], [0], [0], [1], [0, 0, 1, 1], [], []>} : vector<16x64xbf16>, vector<64x362xbf16>, vector<16x362xf32> -> vector<16x362xf32>
    %4 = arith.truncf %3 : vector<16x362xf32> to vector<16x362xbf16>
    %c0_4 = arith.constant 0 : index
    %c0_5 = arith.constant 0 : index
    %c0_6 = arith.constant 0 : index
    %5 = vector.load %arg2[%c0_4, %c0_5, %c0_6] : memref<2x16x362xbf16, #tpu.memory_space<vmem>>, vector<1x16x362xbf16>
    %6 = vector.shape_cast %5 : vector<1x16x362xbf16> to vector<16x362xbf16>
    %c1 = arith.constant 1 : index
    %c0_7 = arith.constant 0 : index
    %c0_8 = arith.constant 0 : index
    %7 = vector.load %arg1[%c1, %c0_7, %c0_8] : memref<2x16x64xbf16, #tpu.memory_space<vmem>>, vector<1x16x64xbf16>
    %8 = vector.shape_cast %7 : vector<1x16x64xbf16> to vector<16x64xbf16>
    %c0_9 = arith.constant 0 : index
    %c0_10 = arith.constant 0 : index
    %9 = vector.load %arg3[%c0_9, %c0_10] : memref<64x362xbf16, #tpu.memory_space<vmem>>, vector<64x362xbf16>
    %cst_11 = arith.constant dense<0.000000e+00> : vector<16x362xf32>
    %10 = tpu.matmul %8, %9, %cst_11 {dimension_numbers = #tpu.dot_dimension_numbers<[1], [0], [0], [1], [0, 0, 1, 1], [], []>} : vector<16x64xbf16>, vector<64x362xbf16>, vector<16x362xf32> -> vector<16x362xf32>
    %11 = arith.truncf %10 : vector<16x362xf32> to vector<16x362xbf16>
    %c1_12 = arith.constant 1 : index
    %c0_13 = arith.constant 0 : index
    %c0_14 = arith.constant 0 : index
    %12 = vector.load %arg2[%c1_12, %c0_13, %c0_14] : memref<2x16x362xbf16, #tpu.memory_space<vmem>>, vector<1x16x362xbf16>
    %13 = vector.shape_cast %12 : vector<1x16x362xbf16> to vector<16x362xbf16>
    %c0_15 = arith.constant 0 : index
    %c0_16 = arith.constant 0 : index
    %14 = vector.load %arg5[%c0_15, %c0_16] : memref<16x144xbf16, #tpu.memory_space<vmem>>, vector<16x144xbf16>
    %15 = vector.extract_strided_slice %4 {offsets = [0, 0], sizes = [16, 324], strides = [1, 1]} : vector<16x362xbf16> to vector<16x324xbf16>
    %16 = vector.extract_strided_slice %11 {offsets = [0, 0], sizes = [16, 324], strides = [1, 1]} : vector<16x362xbf16> to vector<16x324xbf16>
    %17 = tpu.concatenate %15, %16 in 1 : vector<16x324xbf16>, vector<16x324xbf16> -> vector<16x648xbf16>
    %18 = vector.extract_strided_slice %4 {offsets = [0, 1], sizes = [16, 324], strides = [1, 1]} : vector<16x362xbf16> to vector<16x324xbf16>
    %19 = vector.extract_strided_slice %11 {offsets = [0, 1], sizes = [16, 324], strides = [1, 1]} : vector<16x362xbf16> to vector<16x324xbf16>
    %20 = tpu.concatenate %18, %19 in 1 : vector<16x324xbf16>, vector<16x324xbf16> -> vector<16x648xbf16>
    %21 = vector.extract_strided_slice %4 {offsets = [0, 2], sizes = [16, 324], strides = [1, 1]} : vector<16x362xbf16> to vector<16x324xbf16>
    %22 = vector.extract_strided_slice %11 {offsets = [0, 2], sizes = [16, 324], strides = [1, 1]} : vector<16x362xbf16> to vector<16x324xbf16>
    %23 = tpu.concatenate %21, %22 in 1 : vector<16x324xbf16>, vector<16x324xbf16> -> vector<16x648xbf16>
    %24 = vector.extract_strided_slice %4 {offsets = [0, 18], sizes = [16, 324], strides = [1, 1]} : vector<16x362xbf16> to vector<16x324xbf16>
    %25 = vector.extract_strided_slice %11 {offsets = [0, 18], sizes = [16, 324], strides = [1, 1]} : vector<16x362xbf16> to vector<16x324xbf16>
    %26 = tpu.concatenate %24, %25 in 1 : vector<16x324xbf16>, vector<16x324xbf16> -> vector<16x648xbf16>
    %27 = vector.extract_strided_slice %4 {offsets = [0, 19], sizes = [16, 324], strides = [1, 1]} : vector<16x362xbf16> to vector<16x324xbf16>
    %28 = vector.extract_strided_slice %11 {offsets = [0, 19], sizes = [16, 324], strides = [1, 1]} : vector<16x362xbf16> to vector<16x324xbf16>
    %29 = tpu.concatenate %27, %28 in 1 : vector<16x324xbf16>, vector<16x324xbf16> -> vector<16x648xbf16>
    %30 = vector.extract_strided_slice %4 {offsets = [0, 20], sizes = [16, 324], strides = [1, 1]} : vector<16x362xbf16> to vector<16x324xbf16>
    %31 = vector.extract_strided_slice %11 {offsets = [0, 20], sizes = [16, 324], strides = [1, 1]} : vector<16x362xbf16> to vector<16x324xbf16>
    %32 = tpu.concatenate %30, %31 in 1 : vector<16x324xbf16>, vector<16x324xbf16> -> vector<16x648xbf16>
    %33 = vector.extract_strided_slice %4 {offsets = [0, 36], sizes = [16, 324], strides = [1, 1]} : vector<16x362xbf16> to vector<16x324xbf16>
    %34 = vector.extract_strided_slice %11 {offsets = [0, 36], sizes = [16, 324], strides = [1, 1]} : vector<16x362xbf16> to vector<16x324xbf16>
    %35 = tpu.concatenate %33, %34 in 1 : vector<16x324xbf16>, vector<16x324xbf16> -> vector<16x648xbf16>
    %36 = vector.extract_strided_slice %4 {offsets = [0, 37], sizes = [16, 324], strides = [1, 1]} : vector<16x362xbf16> to vector<16x324xbf16>
    %37 = vector.extract_strided_slice %11 {offsets = [0, 37], sizes = [16, 324], strides = [1, 1]} : vector<16x362xbf16> to vector<16x324xbf16>
    %38 = tpu.concatenate %36, %37 in 1 : vector<16x324xbf16>, vector<16x324xbf16> -> vector<16x648xbf16>
    %39 = vector.extract_strided_slice %4 {offsets = [0, 38], sizes = [16, 324], strides = [1, 1]} : vector<16x362xbf16> to vector<16x324xbf16>
    %40 = vector.extract_strided_slice %11 {offsets = [0, 38], sizes = [16, 324], strides = [1, 1]} : vector<16x362xbf16> to vector<16x324xbf16>
    %41 = tpu.concatenate %39, %40 in 1 : vector<16x324xbf16>, vector<16x324xbf16> -> vector<16x648xbf16>
    %42 = tpu.concatenate %17, %20, %23, %26, %29, %32, %35, %38, %41 in 0 : vector<16x648xbf16>, vector<16x648xbf16>, vector<16x648xbf16>, vector<16x648xbf16>, vector<16x648xbf16>, vector<16x648xbf16>, vector<16x648xbf16>, vector<16x648xbf16>, vector<16x648xbf16> -> vector<144x648xbf16>
    %cst_17 = arith.constant dense<0.000000e+00> : vector<16x648xf32>
    %43 = tpu.matmul %14, %42, %cst_17 {dimension_numbers = #tpu.dot_dimension_numbers<[1], [0], [0], [1], [0, 0, 1, 1], [], []>} : vector<16x144xbf16>, vector<144x648xbf16>, vector<16x648xf32> -> vector<16x648xf32>
    %c0_18 = arith.constant 0 : index
    %c0_19 = arith.constant 0 : index
    %44 = vector.load %arg6[%c0_18, %c0_19] : memref<16x144xbf16, #tpu.memory_space<vmem>>, vector<16x144xbf16>
    %45 = vector.extract_strided_slice %6 {offsets = [0, 0], sizes = [16, 324], strides = [1, 1]} : vector<16x362xbf16> to vector<16x324xbf16>
    %46 = vector.extract_strided_slice %13 {offsets = [0, 0], sizes = [16, 324], strides = [1, 1]} : vector<16x362xbf16> to vector<16x324xbf16>
    %47 = tpu.concatenate %45, %46 in 1 : vector<16x324xbf16>, vector<16x324xbf16> -> vector<16x648xbf16>
    %48 = vector.extract_strided_slice %6 {offsets = [0, 1], sizes = [16, 324], strides = [1, 1]} : vector<16x362xbf16> to vector<16x324xbf16>
    %49 = vector.extract_strided_slice %13 {offsets = [0, 1], sizes = [16, 324], strides = [1, 1]} : vector<16x362xbf16> to vector<16x324xbf16>
    %50 = tpu.concatenate %48, %49 in 1 : vector<16x324xbf16>, vector<16x324xbf16> -> vector<16x648xbf16>
    %51 = vector.extract_strided_slice %6 {offsets = [0, 2], sizes = [16, 324], strides = [1, 1]} : vector<16x362xbf16> to vector<16x324xbf16>
    %52 = vector.extract_strided_slice %13 {offsets = [0, 2], sizes = [16, 324], strides = [1, 1]} : vector<16x362xbf16> to vector<16x324xbf16>
    %53 = tpu.concatenate %51, %52 in 1 : vector<16x324xbf16>, vector<16x324xbf16> -> vector<16x648xbf16>
    %54 = vector.extract_strided_slice %6 {offsets = [0, 18], sizes = [16, 324], strides = [1, 1]} : vector<16x362xbf16> to vector<16x324xbf16>
    %55 = vector.extract_strided_slice %13 {offsets = [0, 18], sizes = [16, 324], strides = [1, 1]} : vector<16x362xbf16> to vector<16x324xbf16>
    %56 = tpu.concatenate %54, %55 in 1 : vector<16x324xbf16>, vector<16x324xbf16> -> vector<16x648xbf16>
    %57 = vector.extract_strided_slice %6 {offsets = [0, 19], sizes = [16, 324], strides = [1, 1]} : vector<16x362xbf16> to vector<16x324xbf16>
    %58 = vector.extract_strided_slice %13 {offsets = [0, 19], sizes = [16, 324], strides = [1, 1]} : vector<16x362xbf16> to vector<16x324xbf16>
    %59 = tpu.concatenate %57, %58 in 1 : vector<16x324xbf16>, vector<16x324xbf16> -> vector<16x648xbf16>
    %60 = vector.extract_strided_slice %6 {offsets = [0, 20], sizes = [16, 324], strides = [1, 1]} : vector<16x362xbf16> to vector<16x324xbf16>
    %61 = vector.extract_strided_slice %13 {offsets = [0, 20], sizes = [16, 324], strides = [1, 1]} : vector<16x362xbf16> to vector<16x324xbf16>
    %62 = tpu.concatenate %60, %61 in 1 : vector<16x324xbf16>, vector<16x324xbf16> -> vector<16x648xbf16>
    %63 = vector.extract_strided_slice %6 {offsets = [0, 36], sizes = [16, 324], strides = [1, 1]} : vector<16x362xbf16> to vector<16x324xbf16>
    %64 = vector.extract_strided_slice %13 {offsets = [0, 36], sizes = [16, 324], strides = [1, 1]} : vector<16x362xbf16> to vector<16x324xbf16>
    %65 = tpu.concatenate %63, %64 in 1 : vector<16x324xbf16>, vector<16x324xbf16> -> vector<16x648xbf16>
    %66 = vector.extract_strided_slice %6 {offsets = [0, 37], sizes = [16, 324], strides = [1, 1]} : vector<16x362xbf16> to vector<16x324xbf16>
    %67 = vector.extract_strided_slice %13 {offsets = [0, 37], sizes = [16, 324], strides = [1, 1]} : vector<16x362xbf16> to vector<16x324xbf16>
    %68 = tpu.concatenate %66, %67 in 1 : vector<16x324xbf16>, vector<16x324xbf16> -> vector<16x648xbf16>
    %69 = vector.extract_strided_slice %6 {offsets = [0, 38], sizes = [16, 324], strides = [1, 1]} : vector<16x362xbf16> to vector<16x324xbf16>
    %70 = vector.extract_strided_slice %13 {offsets = [0, 38], sizes = [16, 324], strides = [1, 1]} : vector<16x362xbf16> to vector<16x324xbf16>
    %71 = tpu.concatenate %69, %70 in 1 : vector<16x324xbf16>, vector<16x324xbf16> -> vector<16x648xbf16>
    %72 = tpu.concatenate %47, %50, %53, %56, %59, %62, %65, %68, %71 in 0 : vector<16x648xbf16>, vector<16x648xbf16>, vector<16x648xbf16>, vector<16x648xbf16>, vector<16x648xbf16>, vector<16x648xbf16>, vector<16x648xbf16>, vector<16x648xbf16>, vector<16x648xbf16> -> vector<144x648xbf16>
    %cst_20 = arith.constant dense<0.000000e+00> : vector<16x648xf32>
    %73 = tpu.matmul %44, %72, %cst_20 {dimension_numbers = #tpu.dot_dimension_numbers<[1], [0], [0], [1], [0, 0, 1, 1], [], []>} : vector<16x144xbf16>, vector<144x648xbf16>, vector<16x648xf32> -> vector<16x648xf32>
    %74 = arith.addf %43, %73 : vector<16x648xf32>
    %c0_21 = arith.constant 0 : index
    %c0_22 = arith.constant 0 : index
    %75 = vector.load %arg7[%c0_21, %c0_22] : memref<16x1xf32, #tpu.memory_space<vmem>>, vector<16x1xf32>
    %76 = vector.broadcast %75 : vector<16x1xf32> to vector<16x648xf32>
    %77 = arith.addf %74, %76 : vector<16x648xf32>
    %cst_23 = arith.constant 0.000000e+00 : f32
    %78 = vector.broadcast %cst_23 : f32 to vector<16x648xf32>
    %79 = arith.maximumf %77, %78 : vector<16x648xf32>
    %80 = arith.truncf %79 : vector<16x648xf32> to vector<16x648xbf16>
    %cst_24 = arith.constant 0.000000e+00 : bf16
    %81 = vector.broadcast %cst_24 : bf16 to vector<16x19xbf16>
    %82 = vector.extract_strided_slice %80 {offsets = [0, 0], sizes = [16, 324], strides = [1, 1]} : vector<16x648xbf16> to vector<16x324xbf16>
    %c0_25 = arith.constant 0 : index
    %c0_26 = arith.constant 0 : index
    %83 = vector.load %arg4[%c0_25, %c0_26] : memref<1x324xbf16, #tpu.memory_space<vmem>>, vector<1x324xbf16>
    %84 = vector.broadcast %83 : vector<1x324xbf16> to vector<16x324xbf16>
    %85 = arith.mulf %82, %84 : vector<16x324xbf16>
    %86 = tpu.concatenate %81, %85, %81 in 1 : vector<16x19xbf16>, vector<16x324xbf16>, vector<16x19xbf16> -> vector<16x362xbf16>
    %87 = vector.extract_strided_slice %80 {offsets = [0, 324], sizes = [16, 324], strides = [1, 1]} : vector<16x648xbf16> to vector<16x324xbf16>
    %c0_27 = arith.constant 0 : index
    %c0_28 = arith.constant 0 : index
    %88 = vector.load %arg4[%c0_27, %c0_28] : memref<1x324xbf16, #tpu.memory_space<vmem>>, vector<1x324xbf16>
    %89 = vector.broadcast %88 : vector<1x324xbf16> to vector<16x324xbf16>
    %90 = arith.mulf %87, %89 : vector<16x324xbf16>
    %91 = tpu.concatenate %81, %90, %81 in 1 : vector<16x19xbf16>, vector<16x324xbf16>, vector<16x19xbf16> -> vector<16x362xbf16>
    %c0_29 = arith.constant 0 : index
    %c0_30 = arith.constant 0 : index
    %92 = vector.load %arg8[%c0_29, %c0_30] : memref<16x144xbf16, #tpu.memory_space<vmem>>, vector<16x144xbf16>
    %93 = vector.extract_strided_slice %86 {offsets = [0, 0], sizes = [16, 324], strides = [1, 1]} : vector<16x362xbf16> to vector<16x324xbf16>
    %94 = vector.extract_strided_slice %91 {offsets = [0, 0], sizes = [16, 324], strides = [1, 1]} : vector<16x362xbf16> to vector<16x324xbf16>
    %95 = tpu.concatenate %93, %94 in 1 : vector<16x324xbf16>, vector<16x324xbf16> -> vector<16x648xbf16>
    %96 = vector.extract_strided_slice %86 {offsets = [0, 1], sizes = [16, 324], strides = [1, 1]} : vector<16x362xbf16> to vector<16x324xbf16>
    %97 = vector.extract_strided_slice %91 {offsets = [0, 1], sizes = [16, 324], strides = [1, 1]} : vector<16x362xbf16> to vector<16x324xbf16>
    %98 = tpu.concatenate %96, %97 in 1 : vector<16x324xbf16>, vector<16x324xbf16> -> vector<16x648xbf16>
    %99 = vector.extract_strided_slice %86 {offsets = [0, 2], sizes = [16, 324], strides = [1, 1]} : vector<16x362xbf16> to vector<16x324xbf16>
    %100 = vector.extract_strided_slice %91 {offsets = [0, 2], sizes = [16, 324], strides = [1, 1]} : vector<16x362xbf16> to vector<16x324xbf16>
    %101 = tpu.concatenate %99, %100 in 1 : vector<16x324xbf16>, vector<16x324xbf16> -> vector<16x648xbf16>
    %102 = vector.extract_strided_slice %86 {offsets = [0, 18], sizes = [16, 324], strides = [1, 1]} : vector<16x362xbf16> to vector<16x324xbf16>
    %103 = vector.extract_strided_slice %91 {offsets = [0, 18], sizes = [16, 324], strides = [1, 1]} : vector<16x362xbf16> to vector<16x324xbf16>
    %104 = tpu.concatenate %102, %103 in 1 : vector<16x324xbf16>, vector<16x324xbf16> -> vector<16x648xbf16>
    %105 = vector.extract_strided_slice %86 {offsets = [0, 19], sizes = [16, 324], strides = [1, 1]} : vector<16x362xbf16> to vector<16x324xbf16>
    %106 = vector.extract_strided_slice %91 {offsets = [0, 19], sizes = [16, 324], strides = [1, 1]} : vector<16x362xbf16> to vector<16x324xbf16>
    %107 = tpu.concatenate %105, %106 in 1 : vector<16x324xbf16>, vector<16x324xbf16> -> vector<16x648xbf16>
    %108 = vector.extract_strided_slice %86 {offsets = [0, 20], sizes = [16, 324], strides = [1, 1]} : vector<16x362xbf16> to vector<16x324xbf16>
    %109 = vector.extract_strided_slice %91 {offsets = [0, 20], sizes = [16, 324], strides = [1, 1]} : vector<16x362xbf16> to vector<16x324xbf16>
    %110 = tpu.concatenate %108, %109 in 1 : vector<16x324xbf16>, vector<16x324xbf16> -> vector<16x648xbf16>
    %111 = vector.extract_strided_slice %86 {offsets = [0, 36], sizes = [16, 324], strides = [1, 1]} : vector<16x362xbf16> to vector<16x324xbf16>
    %112 = vector.extract_strided_slice %91 {offsets = [0, 36], sizes = [16, 324], strides = [1, 1]} : vector<16x362xbf16> to vector<16x324xbf16>
    %113 = tpu.concatenate %111, %112 in 1 : vector<16x324xbf16>, vector<16x324xbf16> -> vector<16x648xbf16>
    %114 = vector.extract_strided_slice %86 {offsets = [0, 37], sizes = [16, 324], strides = [1, 1]} : vector<16x362xbf16> to vector<16x324xbf16>
    %115 = vector.extract_strided_slice %91 {offsets = [0, 37], sizes = [16, 324], strides = [1, 1]} : vector<16x362xbf16> to vector<16x324xbf16>
    %116 = tpu.concatenate %114, %115 in 1 : vector<16x324xbf16>, vector<16x324xbf16> -> vector<16x648xbf16>
    %117 = vector.extract_strided_slice %86 {offsets = [0, 38], sizes = [16, 324], strides = [1, 1]} : vector<16x362xbf16> to vector<16x324xbf16>
    %118 = vector.extract_strided_slice %91 {offsets = [0, 38], sizes = [16, 324], strides = [1, 1]} : vector<16x362xbf16> to vector<16x324xbf16>
    %119 = tpu.concatenate %117, %118 in 1 : vector<16x324xbf16>, vector<16x324xbf16> -> vector<16x648xbf16>
    %120 = tpu.concatenate %95, %98, %101, %104, %107, %110, %113, %116, %119 in 0 : vector<16x648xbf16>, vector<16x648xbf16>, vector<16x648xbf16>, vector<16x648xbf16>, vector<16x648xbf16>, vector<16x648xbf16>, vector<16x648xbf16>, vector<16x648xbf16>, vector<16x648xbf16> -> vector<144x648xbf16>
    %cst_31 = arith.constant dense<0.000000e+00> : vector<16x648xf32>
    %121 = tpu.matmul %92, %120, %cst_31 {dimension_numbers = #tpu.dot_dimension_numbers<[1], [0], [0], [1], [0, 0, 1, 1], [], []>} : vector<16x144xbf16>, vector<144x648xbf16>, vector<16x648xf32> -> vector<16x648xf32>
    %c0_32 = arith.constant 0 : index
    %c0_33 = arith.constant 0 : index
    %122 = vector.load %arg9[%c0_32, %c0_33] : memref<16x1xf32, #tpu.memory_space<vmem>>, vector<16x1xf32>
    %123 = vector.broadcast %122 : vector<16x1xf32> to vector<16x648xf32>
    %124 = arith.addf %121, %123 : vector<16x648xf32>
    %cst_34 = arith.constant 0.000000e+00 : f32
    %125 = vector.broadcast %cst_34 : f32 to vector<16x648xf32>
    %126 = arith.maximumf %124, %125 : vector<16x648xf32>
    %127 = vector.extract_strided_slice %126 {offsets = [0, 0], sizes = [16, 324], strides = [1, 1]} : vector<16x648xf32> to vector<16x324xf32>
    %c0_35 = arith.constant 0 : index
    %c0_36 = arith.constant 0 : index
    %c0_37 = arith.constant 0 : index
    %128 = vector.load %arg10[%c0_35, %c0_36, %c0_37] : memref<2x16x324xf32, #tpu.memory_space<vmem>>, vector<1x16x324xf32>
    %129 = vector.shape_cast %128 : vector<1x16x324xf32> to vector<16x324xf32>
    %130 = vector.shape_cast %127 : vector<16x324xf32> to vector<1x16x324xf32>
    tpu.vector_store %arg10[%c0_35, %c0_36, %c0_37], %130 {strides = array<i32>} : memref<2x16x324xf32, #tpu.memory_space<vmem>>, vector<1x16x324xf32>,
    %131 = vector.extract_strided_slice %126 {offsets = [0, 324], sizes = [16, 324], strides = [1, 1]} : vector<16x648xf32> to vector<16x324xf32>
    %c1_38 = arith.constant 1 : index
    %c0_39 = arith.constant 0 : index
    %c0_40 = arith.constant 0 : index
    %132 = vector.load %arg10[%c1_38, %c0_39, %c0_40] : memref<2x16x324xf32, #tpu.memory_space<vmem>>, vector<1x16x324xf32>
    %133 = vector.shape_cast %132 : vector<1x16x324xf32> to vector<16x324xf32>
    %134 = vector.shape_cast %131 : vector<16x324xf32> to vector<1x16x324xf32>
    tpu.vector_store %arg10[%c1_38, %c0_39, %c0_40], %134 {strides = array<i32>} : memref<2x16x324xf32, #tpu.memory_space<vmem>>, vector<1x16x324xf32>,
    return
  }
  func.func @transform_0(%arg0: i32) -> (i32, i32, i32) {
    %c0_i32 = arith.constant 0 : i32
    %c0_i32_0 = arith.constant 0 : i32
    %c0_i32_1 = arith.constant 0 : i32
    return %arg0, %c0_i32, %c0_i32_0 : i32, i32, i32
  }
  func.func @transform_1(%arg0: i32) -> (i32, i32, i32) {
    %c0_i32 = arith.constant 0 : i32
    %c0_i32_0 = arith.constant 0 : i32
    %c0_i32_1 = arith.constant 0 : i32
    return %arg0, %c0_i32, %c0_i32_0 : i32, i32, i32
  }
  func.func @transform_2(%arg0: i32) -> (i32, i32) {
    %c0_i32 = arith.constant 0 : i32
    %c0_i32_0 = arith.constant 0 : i32
    %c0_i32_1 = arith.constant 0 : i32
    return %c0_i32, %c0_i32_0 : i32, i32
  }
  func.func @transform_3(%arg0: i32) -> (i32, i32) {
    %c0_i32 = arith.constant 0 : i32
    %c0_i32_0 = arith.constant 0 : i32
    %c0_i32_1 = arith.constant 0 : i32
    return %c0_i32, %c0_i32_0 : i32, i32
  }
  func.func @transform_4(%arg0: i32) -> (i32, i32) {
    %c0_i32 = arith.constant 0 : i32
    %c0_i32_0 = arith.constant 0 : i32
    %c0_i32_1 = arith.constant 0 : i32
    return %c0_i32, %c0_i32_0 : i32, i32
  }
  func.func @transform_5(%arg0: i32) -> (i32, i32) {
    %c0_i32 = arith.constant 0 : i32
    %c0_i32_0 = arith.constant 0 : i32
    %c0_i32_1 = arith.constant 0 : i32
    return %c0_i32, %c0_i32_0 : i32, i32
  }
  func.func @transform_6(%arg0: i32) -> (i32, i32) {
    %c0_i32 = arith.constant 0 : i32
    %c0_i32_0 = arith.constant 0 : i32
    %c0_i32_1 = arith.constant 0 : i32
    return %c0_i32, %c0_i32_0 : i32, i32
  }
  func.func @transform_7(%arg0: i32) -> (i32, i32) {
    %c0_i32 = arith.constant 0 : i32
    %c0_i32_0 = arith.constant 0 : i32
    %c0_i32_1 = arith.constant 0 : i32
    return %c0_i32, %c0_i32_0 : i32, i32
  }
  func.func @transform_8(%arg0: i32) -> (i32, i32) {
    %c0_i32 = arith.constant 0 : i32
    %c0_i32_0 = arith.constant 0 : i32
    %c0_i32_1 = arith.constant 0 : i32
    return %c0_i32, %c0_i32_0 : i32, i32
  }
  func.func @transform_9(%arg0: i32) -> (i32, i32, i32) {
    %c0_i32 = arith.constant 0 : i32
    %c0_i32_0 = arith.constant 0 : i32
    %c0_i32_1 = arith.constant 0 : i32
    return %arg0, %c0_i32, %c0_i32_0 : i32, i32, i32
  }
}

</mosaic_0001>

<llo_original>
// kernel: expanding_stack_forward.1
$region0: #{expanding_stack_forward.1}
  #allocation0 [shape = 'u32[]', space=smem, size = 0x4, offset = 0x4, fixed_abs, tag = 'smem constant byte address 0x4 - core index']
  #allocation1 [shape = 'u32[144,128]{1,0:T(1,128)}', space=vmem, size = 0x12000, scoped, tag = 'internal scratch']
  %s0 = inlined_call_operand.vmem [shape: bf16[4,16,64], index: 0, kind: input, shape index: {}]
  %s1 = inlined_call_operand.vmem [shape: bf16[4,16,362], index: 1, kind: input, shape index: {}]
  %s2 = inlined_call_operand.vmem [shape: bf16[64,362], index: 2, kind: input, shape index: {}]
  %s3 = inlined_call_operand.vmem [shape: bf16[1,324], index: 3, kind: input, shape index: {}]
  %s4 = inlined_call_operand.vmem [shape: bf16[16,144], index: 4, kind: input, shape index: {}]
  %s5 = inlined_call_operand.vmem [shape: bf16[16,144], index: 5, kind: input, shape index: {}]
  %s6 = inlined_call_operand.vmem [shape: f32[16,1], index: 6, kind: input, shape index: {}]
  %s7 = inlined_call_operand.vmem [shape: bf16[16,144], index: 7, kind: input, shape index: {}]
  %s8 = inlined_call_operand.vmem [shape: f32[16,1], index: 8, kind: input, shape index: {}]
  %s9 = inlined_call_operand.vmem [shape: f32[4,16,324], index: 9, kind: output, shape index: {}]
  %s10 = sld [smem:[#allocation0]]
  $region69: #{expanding_stack_forward.1} parent=0
    _
  %s12 = ssub.s32 1, %s10
  %s13 = scalar_select 0, %s12, %s10
  loop: start=0, step=1, limit=4
  $region2: #{expanding_stack_forward.1} parent=0 // loop_pre_header
    _
  $region3: #{expanding_stack_forward.1} parent=0 // loop_header
    %s15 = sphi 0, %s19
    %p16 = scmp.ge.s32.totalorder %s15, 4
    %s25 = sphi 0, %s27
    %s28 = sphi 0, %s25
    %s29 = sphi 0, %s28
    %s45 = sphi 0, %s29
    %s51 = sphi 0, %s53
    %s54 = sphi 0, %s51
    %s55 = sphi 0, %s54
    %s71 = sphi 0, %s55
    %s75 = sphi 0, %s75
    %s77 = sphi 0, %s75
    %s78 = sphi 0, %s77
    %s92 = sphi 0, %s78
    %s96 = sphi 0, %s96
    %s98 = sphi 0, %s96
    %s99 = sphi 0, %s98
    %s113 = sphi 0, %s99
    %s117 = sphi 0, %s117
    %s119 = sphi 0, %s117
    %s120 = sphi 0, %s119
    %s134 = sphi 0, %s120
    %s138 = sphi 0, %s138
    %s140 = sphi 0, %s138
    %s141 = sphi 0, %s140
    %s155 = sphi 0, %s141
    %s159 = sphi 0, %s159
    %s161 = sphi 0, %s159
    %s162 = sphi 0, %s161
    %s176 = sphi 0, %s162
    %s180 = sphi 0, %s180
    %s182 = sphi 0, %s180
    %s183 = sphi 0, %s182
    %s197 = sphi 0, %s183
    %s201 = sphi 0, %s201
    %s203 = sphi 0, %s201
    %s204 = sphi 0, %s203
    %s218 = sphi 0, %s204
    %s224 = sphi 0, %s226
    %s227 = sphi 0, %s224
    %s228 = sphi 0, %s227
    %s244 = sphi 0, %s228
  $region4: #{expanding_stack_forward.1} parent=0 // loop_header_branch
    %18 = sbr.rel (%p16) target = $region8
  $region5: #{expanding_stack_forward.1} parent=0 // loop_body
    %s20 = ssub.s32 %s15, 1
    %s21 = ssub.s32 %s15, 2
    %s22 = sadd.s32 %s15, 1
    %s23 = ssub.s32 %s15, %s22
    %p24 = scmp.eq.s32.totalorder %s23, 0
    %s26 = sadd.s32 %s25, 1
    %s27 = scalar_select %p24, %s25, %s26
    %p30 = pneg %p24
    %p31 = scmp.eq.s32.totalorder %s15, 1
    %p32 = por %p30, %p31
    %p33 = scmp.ne.s32.totalorder %s25, %s28
    %p34 = scmp.eq.s32.totalorder %s15, 0
    %p35 = por %p33, %p34
    %p36 = scmp.ne.s32.totalorder %s25, %s28
    %p37 = scmp.eq.s32.totalorder %s20, 1
    %p38 = por %p36, %p37
    %p39 = scmp.ne.s32.totalorder %s28, %s29
    %p40 = scmp.eq.s32.totalorder %s20, 0
    %p41 = por %p39, %p40
    %p42 = scmp.ne.s32.totalorder %s28, %s29
    %p43 = scmp.eq.s32.totalorder %s21, 1
    %p44 = por %p42, %p43
    %p46 = scmp.ne.s32.totalorder %s29, %s45
    %p47 = scmp.eq.s32.totalorder %s21, 0
    %p48 = por %p46, %p47
    %s49 = ssub.s32 %s15, %s22
    %p50 = scmp.eq.s32.totalorder %s49, 0
    %s52 = sadd.s32 %s51, 1
    %s53 = scalar_select %p50, %s51, %s52
    %p56 = pneg %p50
    %p57 = scmp.eq.s32.totalorder %s15, 1
    %p58 = por %p56, %p57
    %p59 = scmp.ne.s32.totalorder %s51, %s54
    %p60 = scmp.eq.s32.totalorder %s15, 0
    %p61 = por %p59, %p60
    %p62 = scmp.ne.s32.totalorder %s51, %s54
    %p63 = scmp.eq.s32.totalorder %s20, 1
    %p64 = por %p62, %p63
    %p65 = scmp.ne.s32.totalorder %s54, %s55
    %p66 = scmp.eq.s32.totalorder %s20, 0
    %p67 = por %p65, %p66
    %p68 = scmp.ne.s32.totalorder %s54, %s55
    %p69 = scmp.eq.s32.totalorder %s21, 1
    %p70 = por %p68, %p69
    %p72 = scmp.ne.s32.totalorder %s55, %s71
    %p73 = scmp.eq.s32.totalorder %s21, 0
    %p74 = por %p72, %p73
    %s76 = sadd.s32 %s75, 1
    %p79 = scmp.eq.s32.totalorder %s15, 1
    %p80 = scmp.ne.s32.totalorder %s75, %s77
    %p81 = scmp.eq.s32.totalorder %s15, 0
    %p82 = por %p80, %p81
    %p83 = scmp.ne.s32.totalorder %s75, %s77
    %p84 = scmp.eq.s32.totalorder %s20, 1
    %p85 = por %p83, %p84
    %p86 = scmp.ne.s32.totalorder %s77, %s78
    %p87 = scmp.eq.s32.totalorder %s20, 0
    %p88 = por %p86, %p87
    %p89 = scmp.ne.s32.totalorder %s77, %s78
    %p90 = scmp.eq.s32.totalorder %s21, 1
    %p91 = por %p89, %p90
    %p93 = scmp.ne.s32.totalorder %s78, %s92
    %p94 = scmp.eq.s32.totalorder %s21, 0
    %p95 = por %p93, %p94
    %s97 = sadd.s32 %s96, 1
    %p100 = scmp.eq.s32.totalorder %s15, 1
    %p101 = scmp.ne.s32.totalorder %s96, %s98
    %p102 = scmp.eq.s32.totalorder %s15, 0
    %p103 = por %p101, %p102
    %p104 = scmp.ne.s32.totalorder %s96, %s98
    %p105 = scmp.eq.s32.totalorder %s20, 1
    %p106 = por %p104, %p105
    %p107 = scmp.ne.s32.totalorder %s98, %s99
    %p108 = scmp.eq.s32.totalorder %s20, 0
    %p109 = por %p107, %p108
    %p110 = scmp.ne.s32.totalorder %s98, %s99
    %p111 = scmp.eq.s32.totalorder %s21, 1
    %p112 = por %p110, %p111
    %p114 = scmp.ne.s32.totalorder %s99, %s113
    %p115 = scmp.eq.s32.totalorder %s21, 0
    %p116 = por %p114, %p115
    %s118 = sadd.s32 %s117, 1
    %p121 = scmp.eq.s32.totalorder %s15, 1
    %p122 = scmp.ne.s32.totalorder %s117, %s119
    %p123 = scmp.eq.s32.totalorder %s15, 0
    %p124 = por %p122, %p123
    %p125 = scmp.ne.s32.totalorder %s117, %s119
    %p126 = scmp.eq.s32.totalorder %s20, 1
    %p127 = por %p125, %p126
    %p128 = scmp.ne.s32.totalorder %s119, %s120
    %p129 = scmp.eq.s32.totalorder %s20, 0
    %p130 = por %p128, %p129
    %p131 = scmp.ne.s32.totalorder %s119, %s120
    %p132 = scmp.eq.s32.totalorder %s21, 1
    %p133 = por %p131, %p132
    %p135 = scmp.ne.s32.totalorder %s120, %s134
    %p136 = scmp.eq.s32.totalorder %s21, 0
    %p137 = por %p135, %p136
    %s139 = sadd.s32 %s138, 1
    %p142 = scmp.eq.s32.totalorder %s15, 1
    %p143 = scmp.ne.s32.totalorder %s138, %s140
    %p144 = scmp.eq.s32.totalorder %s15, 0
    %p145 = por %p143, %p144
    %p146 = scmp.ne.s32.totalorder %s138, %s140
    %p147 = scmp.eq.s32.totalorder %s20, 1
    %p148 = por %p146, %p147
    %p149 = scmp.ne.s32.totalorder %s140, %s141
    %p150 = scmp.eq.s32.totalorder %s20, 0
    %p151 = por %p149, %p150
    %p152 = scmp.ne.s32.totalorder %s140, %s141
    %p153 = scmp.eq.s32.totalorder %s21, 1
    %p154 = por %p152, %p153
    %p156 = scmp.ne.s32.totalorder %s141, %s155
    %p157 = scmp.eq.s32.totalorder %s21, 0
    %p158 = por %p156, %p157
    %s160 = sadd.s32 %s159, 1
    %p163 = scmp.eq.s32.totalorder %s15, 1
    %p164 = scmp.ne.s32.totalorder %s159, %s161
    %p165 = scmp.eq.s32.totalorder %s15, 0
    %p166 = por %p164, %p165
    %p167 = scmp.ne.s32.totalorder %s159, %s161
    %p168 = scmp.eq.s32.totalorder %s20, 1
    %p169 = por %p167, %p168
    %p170 = scmp.ne.s32.totalorder %s161, %s162
    %p171 = scmp.eq.s32.totalorder %s20, 0
    %p172 = por %p170, %p171
    %p173 = scmp.ne.s32.totalorder %s161, %s162
    %p174 = scmp.eq.s32.totalorder %s21, 1
    %p175 = por %p173, %p174
    %p177 = scmp.ne.s32.totalorder %s162, %s176
    %p178 = scmp.eq.s32.totalorder %s21, 0
    %p179 = por %p177, %p178
    %s181 = sadd.s32 %s180, 1
    %p184 = scmp.eq.s32.totalorder %s15, 1
    %p185 = scmp.ne.s32.totalorder %s180, %s182
    %p186 = scmp.eq.s32.totalorder %s15, 0
    %p187 = por %p185, %p186
    %p188 = scmp.ne.s32.totalorder %s180, %s182
    %p189 = scmp.eq.s32.totalorder %s20, 1
    %p190 = por %p188, %p189
    %p191 = scmp.ne.s32.totalorder %s182, %s183
    %p192 = scmp.eq.s32.totalorder %s20, 0
    %p193 = por %p191, %p192
    %p194 = scmp.ne.s32.totalorder %s182, %s183
    %p195 = scmp.eq.s32.totalorder %s21, 1
    %p196 = por %p194, %p195
    %p198 = scmp.ne.s32.totalorder %s183, %s197
    %p199 = scmp.eq.s32.totalorder %s21, 0
    %p200 = por %p198, %p199
    %s202 = sadd.s32 %s201, 1
    %p205 = scmp.eq.s32.totalorder %s15, 1
    %p206 = scmp.ne.s32.totalorder %s201, %s203
    %p207 = scmp.eq.s32.totalorder %s15, 0
    %p208 = por %p206, %p207
    %p209 = scmp.ne.s32.totalorder %s201, %s203
    %p210 = scmp.eq.s32.totalorder %s20, 1
    %p211 = por %p209, %p210
    %p212 = scmp.ne.s32.totalorder %s203, %s204
    %p213 = scmp.eq.s32.totalorder %s20, 0
    %p214 = por %p212, %p213
    %p215 = scmp.ne.s32.totalorder %s203, %s204
    %p216 = scmp.eq.s32.totalorder %s21, 1
    %p217 = por %p215, %p216
    %p219 = scmp.ne.s32.totalorder %s204, %s218
    %p220 = scmp.eq.s32.totalorder %s21, 0
    %p221 = por %p219, %p220
    %s222 = ssub.s32 %s15, %s22
    %p223 = scmp.eq.s32.totalorder %s222, 0
    %s225 = sadd.s32 %s224, 1
    %s226 = scalar_select %p223, %s224, %s225
    %p229 = pneg %p223
    %p230 = scmp.eq.s32.totalorder %s15, 1
    %p231 = por %p229, %p230
    %p232 = scmp.ne.s32.totalorder %s224, %s227
    %p233 = scmp.eq.s32.totalorder %s15, 0
    %p234 = por %p232, %p233
    %p235 = scmp.ne.s32.totalorder %s224, %s227
    %p236 = scmp.eq.s32.totalorder %s20, 1
    %p237 = por %p235, %p236
    %p238 = scmp.ne.s32.totalorder %s227, %s228
    %p239 = scmp.eq.s32.totalorder %s20, 0
    %p240 = por %p238, %p239
    %p241 = scmp.ne.s32.totalorder %s227, %s228
    %p242 = scmp.eq.s32.totalorder %s21, 1
    %p243 = por %p241, %p242
    %p245 = scmp.ne.s32.totalorder %s228, %s244
    %p246 = scmp.eq.s32.totalorder %s21, 0
    %p247 = por %p245, %p246
    %p248 = scmp.le.s32.totalorder 1, %s15
    %p249 = scmp.lt.s32.totalorder %s15, 3
    %p250 = pnand %p248, %p249
    %p251 = pneg %p250
    // Predicated region
    $region9: #{expanding_stack_forward.1} parent=5 // pred_check
      _
    $region10: #{expanding_stack_forward.1} parent=5 // pred_check_branch
      %253 = sbr.rel (%p250) target = $region12
    $region11: #{expanding_stack_forward.1} parent=5 // pred_region
      %s254 = ssub.s32 %s15, 1
      // Predicated region
      $region13: #{expanding_stack_forward.1} parent=11 // pred_check
        %p255 = pneg %p88
      $region14: #{expanding_stack_forward.1} parent=11 // pred_check_branch
        %257 = sbr.rel (%p255) target = $region16
      $region15: #{expanding_stack_forward.1} parent=11 // pred_region
        _
      $region16: #{expanding_stack_forward.1} parent=11 // pred_fallthru
        _
      // Predicated region
      $region17: #{expanding_stack_forward.1} parent=11 // pred_check
        %p258 = pneg %p109
      $region18: #{expanding_stack_forward.1} parent=11 // pred_check_branch
        %260 = sbr.rel (%p258) target = $region20
      $region19: #{expanding_stack_forward.1} parent=11 // pred_region
        _
      $region20: #{expanding_stack_forward.1} parent=11 // pred_fallthru
        _
      // Predicated region
      $region21: #{expanding_stack_forward.1} parent=11 // pred_check
        %p261 = pneg %p130
      $region22: #{expanding_stack_forward.1} parent=11 // pred_check_branch
        %263 = sbr.rel (%p261) target = $region24
      $region23: #{expanding_stack_forward.1} parent=11 // pred_region
        _
      $region24: #{expanding_stack_forward.1} parent=11 // pred_fallthru
        _
      // Predicated region
      $region25: #{expanding_stack_forward.1} parent=11 // pred_check
        %p264 = pneg %p151
      $region26: #{expanding_stack_forward.1} parent=11 // pred_check_branch
        %266 = sbr.rel (%p264) target = $region28
      $region27: #{expanding_stack_forward.1} parent=11 // pred_region
        _
      $region28: #{expanding_stack_forward.1} parent=11 // pred_fallthru
        _
      // Predicated region
      $region29: #{expanding_stack_forward.1} parent=11 // pred_check
        %p267 = pneg %p172
      $region30: #{expanding_stack_forward.1} parent=11 // pred_check_branch
        %269 = sbr.rel (%p267) target = $region32
      $region31: #{expanding_stack_forward.1} parent=11 // pred_region
        _
      $region32: #{expanding_stack_forward.1} parent=11 // pred_fallthru
        _
      // Predicated region
      $region33: #{expanding_stack_forward.1} parent=11 // pred_check
        %p270 = pneg %p193
      $region34: #{expanding_stack_forward.1} parent=11 // pred_check_branch
        %272 = sbr.rel (%p270) target = $region36
      $region35: #{expanding_stack_forward.1} parent=11 // pred_region
        _
      $region36: #{expanding_stack_forward.1} parent=11 // pred_fallthru
        _
      // Predicated region
      $region37: #{expanding_stack_forward.1} parent=11 // pred_check
        %p273 = pneg %p214
      $region38: #{expanding_stack_forward.1} parent=11 // pred_check_branch
        %275 = sbr.rel (%p273) target = $region40
      $region39: #{expanding_stack_forward.1} parent=11 // pred_region
        _
      $region40: #{expanding_stack_forward.1} parent=11 // pred_fallthru
        _
    $region12: #{expanding_stack_forward.1} parent=5 // pred_fallthru
      _
    %p276 = scmp.lt.s32.totalorder %s15, 2
    // Predicated region
    $region41: #{expanding_stack_forward.1} parent=5 // pred_check
      %p277 = pneg %p276
    $region42: #{expanding_stack_forward.1} parent=5 // pred_check_branch
      %279 = sbr.rel (%p277) target = $region44
    $region43: #{expanding_stack_forward.1} parent=5 // pred_region
      // Predicated region
      $region45: #{expanding_stack_forward.1} parent=43 // pred_check
        %p280 = pneg %p35
      $region46: #{expanding_stack_forward.1} parent=43 // pred_check_branch
        %282 = sbr.rel (%p280) target = $region48
      $region47: #{expanding_stack_forward.1} parent=43 // pred_region
        %s283 = smul.u32 2, %s15
        %p284 = scmp.lt.s32.totalorder %s283, 3
        %s285 = scalar_select %p284, %s283, 3
        %s286 = smul.addr %s285, 2
        %s287 = smul.addr %s286, 4
        %s288 = scalar_lea.vmem %s0, %s287
        %s289 = smul.u32 2, %s15
      $region48: #{expanding_stack_forward.1} parent=43 // pred_fallthru
        _
      // Predicated region
      $region49: #{expanding_stack_forward.1} parent=43 // pred_check
        %p290 = pneg %p61
      $region50: #{expanding_stack_forward.1} parent=43 // pred_check_branch
        %292 = sbr.rel (%p290) target = $region52
      $region51: #{expanding_stack_forward.1} parent=43 // pred_region
        %s293 = smul.u32 2, %s15
        %p294 = scmp.lt.s32.totalorder %s293, 3
        %s295 = scalar_select %p294, %s293, 3
        %s296 = smul.addr %s295, 6
        %s297 = smul.addr %s296, 4
        %s298 = scalar_lea.vmem %s1, %s297
        %s299 = smul.u32 2, %s15
      $region52: #{expanding_stack_forward.1} parent=43 // pred_fallthru
        _
    $region44: #{expanding_stack_forward.1} parent=5 // pred_fallthru
      _
    %p300 = scmp.le.s32.totalorder 1, %s15
    %p301 = scmp.lt.s32.totalorder %s15, 3
    %p302 = pnand %p300, %p301
    %p303 = pneg %p302
    // Predicated region
    $region53: #{expanding_stack_forward.1} parent=5 // pred_check
      _
    $region54: #{expanding_stack_forward.1} parent=5 // pred_check_branch
      %305 = sbr.rel (%p302) target = $region56
    $region55: #{expanding_stack_forward.1} parent=5 // pred_region
      %s306 = ssub.s32 %s15, 1
      %s307 = smul.u32 2, %s20
      %p308 = scmp.lt.s32.totalorder %s307, 3
      %s309 = scalar_select %p308, %s307, 3
      %s310 = smul.addr %s309, 2
      %s311 = smul.addr %s310, 4
      %s312 = scalar_lea.vmem %s0, %s311
      %p313 = pneg %p41
      %p314 = pneg %p38
      %s315 = smul.u32 2, %s20
      %p316 = scmp.lt.s32.totalorder %s315, 3
      %s317 = scalar_select %p316, %s315, 3
      %s318 = smul.addr %s317, 6
      %s319 = smul.addr %s318, 4
      %s320 = scalar_lea.vmem %s1, %s319
      %p321 = pneg %p67
      %p322 = pneg %p64
      %p323 = pneg %p88
      %p324 = pneg %p85
      %p325 = pneg %p109
      %p326 = pneg %p106
      %p327 = pneg %p130
      %p328 = pneg %p127
      %p329 = pneg %p151
      %p330 = pneg %p148
      %p331 = pneg %p172
      %p332 = pneg %p169
      %p333 = pneg %p193
      %p334 = pneg %p190
      %p335 = pneg %p214
      %p336 = pneg %p211
      %p337 = pneg %p240
      %p338 = pneg %p237
      %s339 = smul.u32 2, %s20
      %p340 = scmp.lt.s32.totalorder %s339, 3
      %s341 = scalar_select %p340, %s339, 3
      %s342 = smul.addr %s341, 6
      %s343 = smul.addr %s342, 8
      %s344 = scalar_lea.vmem %s9, %s343
      %s345 = smul.u32 2, %s20
      %p346 = scmp.lt.s32.totalorder %s345, 3
      %s347 = scalar_select %p346, %s345, 3
      %s348 = smul.addr %s347, 2
      %s349 = smul.addr %s348, 4
      %s350 = scalar_lea.vmem %s0, %s349
      %s351 = smul.u32 2, %s20
      %s352 = smul.u32 2, %s20
      %p353 = scmp.lt.s32.totalorder %s352, 3
      %s354 = scalar_select %p353, %s352, 3
      %s355 = smul.addr %s354, 6
      %s356 = smul.addr %s355, 4
      %s357 = scalar_lea.vmem %s1, %s356
      %s358 = smul.u32 2, %s20
      %s359 = smul.u32 2, %s20
      %p360 = scmp.lt.s32.totalorder %s359, 3
      %s361 = scalar_select %p360, %s359, 3
      %s362 = smul.addr %s361, 6
      %s363 = smul.addr %s362, 8
      %s364 = scalar_lea.vmem %s9, %s363
      %s365 = smul.u32 2, %s20
      %v367 = vld [vmem:[%s350] sm:$0xf]
      %v368 = vld [vmem:[%s350 + $0x4] sm:$0xf]
      %v369 = vld [vmem:[%s2] sm:$0xff]
      %v370 = vld [vmem:[%s2 + $0x8] sm:$0xf]
      %v371 = vld [vmem:[%s2 + $0xc] sm:$0xff]
      %v372 = vld [vmem:[%s2 + $0x14] sm:$0xf]
      %v373 = vld [vmem:[%s2 + $0x18] sm:$0xff]
      %v374 = vld [vmem:[%s2 + $0x20] sm:$0xf]
      %v375 = vld [vmem:[%s2 + $0x24] sm:$0xff]
      %v376 = vld [vmem:[%s2 + $0x2c] sm:$0xf]
      %v377 = vld [vmem:[%s2 + $0x30] sm:$0xff]
      %v378 = vld [vmem:[%s2 + $0x38] sm:$0xf]
      %v379 = vld [vmem:[%s2 + $0x3c] sm:$0xff]
      %v380 = vld [vmem:[%s2 + $0x44] sm:$0xf]
      %v381 = vld [vmem:[%s2 + $0x48] sm:$0xff]
      %v382 = vld [vmem:[%s2 + $0x50] sm:$0xf]
      %v383 = vld [vmem:[%s2 + $0x54] sm:$0xff]
      %v384 = vld [vmem:[%s2 + $0x5c] sm:$0xf]
      %v387 = vunpack.c.l.b16 %v367
      %v388 = vunpack.c.l.b16 %v368
      %v389 = vpack.c.b16 %v388, %v387
      %v406 = vunpack.c.l.b16 %v369
      %v407 = vunpack.c.h.b16 %v369
      %v408 = vunpack.c.l.b16 %v370
      %v409 = vunpack.c.l.b16 %v371
      %v410 = vunpack.c.h.b16 %v371
      %v411 = vunpack.c.l.b16 %v372
      %v412 = vunpack.c.l.b16 %v373
      %v413 = vunpack.c.h.b16 %v373
      %v414 = vunpack.c.l.b16 %v374
      %v415 = vunpack.c.l.b16 %v375
      %v416 = vunpack.c.h.b16 %v375
      %v417 = vunpack.c.l.b16 %v376
      %v418 = vunpack.c.l.b16 %v377
      %v419 = vunpack.c.h.b16 %v377
      %v420 = vunpack.c.l.b16 %v378
      %v421 = vunpack.c.l.b16 %v379
      %v422 = vunpack.c.h.b16 %v379
      %v423 = vunpack.c.l.b16 %v380
      %v424 = vunpack.c.l.b16 %v381
      %v425 = vunpack.c.h.b16 %v381
      %v426 = vunpack.c.l.b16 %v382
      %v427 = vunpack.c.l.b16 %v383
      %v428 = vunpack.c.h.b16 %v383
      %v429 = vunpack.c.l.b16 %v384
      %v430 = vpack.c.b16 %v409, %v406
      %v431 = vpack.c.b16 %v410, %v407
      %v432 = vpack.c.b16 %v411, %v408
      %v433 = vpack.c.b16 %v415, %v412
      %v434 = vpack.c.b16 %v416, %v413
      %v435 = vpack.c.b16 %v417, %v414
      %v436 = vpack.c.b16 %v421, %v418
      %v437 = vpack.c.b16 %v422, %v419
      %v438 = vpack.c.b16 %v423, %v420
      %v439 = vpack.c.b16 %v427, %v424
      %v440 = vpack.c.b16 %v428, %v425
      %v441 = vpack.c.b16 %v429, %v426
      %vm454 = vcmask 523264
      %v456 = vsel %vm454, %v389, 0
      %458 = vmatprep.subr.bf16.mxu0 %v431
      %459 = vmatpush1.bf16.msra.mxu0 %v430
      %460 = vmatprep.subr.bf16.mxu0 %v434
      %461 = vmatpush1.bf16.msra.mxu0 %v433
      %462 = vmatprep.subr.bf16.mxu0 %v437
      %463 = vmatpush1.bf16.msra.mxu0 %v436
      %464 = vmatprep.subr.bf16.mxu0 %v440
      %465 = vmatpush1.bf16.msra.mxu0 %v439
      %466 = vmatprep.subr.bf16.mxu0 0
      %467 = vmatpush1.bf16.msra.mxu0 0
      %468 = vmatprep.subr.bf16.mxu0 0
      %469 = vmatpush1.bf16.msra.mxu0 0
      %470 = vmatprep.subr.bf16.mxu0 0
      %471 = vmatpush1.bf16.msra.mxu0 0
      %472 = vmatprep.subr.bf16.mxu0 0
      %473 = vmatpush1.bf16.msra.mxu0 0
      %474 = vmatprep.subr.bf16.mxu0 0
      %475 = vmatpush1.bf16.msra.mxu0 0
      %476 = vmatprep.subr.bf16.mxu0 0
      %477 = vmatpush1.bf16.msra.mxu0 0
      %478 = vmatprep.subr.bf16.mxu0 0
      %479 = vmatpush1.bf16.msra.mxu0 0
      %480 = vmatprep.subr.bf16.mxu0 0
      %481 = vmatpush1.bf16.msra.mxu0 0
      %482 = vmatprep.subr.bf16.mxu0 0
      %483 = vmatpush1.bf16.msra.mxu0 0
      %484 = vmatprep.subr.bf16.mxu0 0
      %485 = vmatpush1.bf16.msra.mxu0 0
      %486 = vmatprep.subr.bf16.mxu0 0
      %487 = vmatpush1.bf16.msra.mxu0 0
      %488 = vmatprep.subr.bf16.mxu0 0
      %489 = vmatpush1.bf16.msra.mxu0 0
      %490 = vmatprep.mubr.bf16.mxu0 0
      %491 = vmatmul.mubr.bf16.gmra.mrb[0].mxu0 %v456
      %v492 = vpop.f32.mrb[0].mxu0
      %v493 = vadd.f32 0.0, %v492
      %v494 = vpop.f32.mrb[0].mxu0
      %v495 = vadd.f32 0.0, %v494
      %v496 = vpop.f32.mrb[0].mxu0
      %v497 = vadd.f32 0.0, %v496
      %v498 = vpop.f32.mrb[0].mxu0
      %v499 = vadd.f32 0.0, %v498
      %500 = vdwg.mxu0
      %501 = vmatprep.subr.bf16.mxu0 0
      %502 = vmatpush1.bf16.msra.mxu0 %v432
      %503 = vmatprep.subr.bf16.mxu0 0
      %504 = vmatpush1.bf16.msra.mxu0 %v435
      %505 = vmatprep.subr.bf16.mxu0 0
      %506 = vmatpush1.bf16.msra.mxu0 %v438
      %507 = vmatprep.subr.bf16.mxu0 0
      %508 = vmatpush1.bf16.msra.mxu0 %v441
      %509 = vmatprep.subr.bf16.mxu0 0
      %510 = vmatpush1.bf16.msra.mxu0 0
      %511 = vmatprep.subr.bf16.mxu0 0
      %512 = vmatpush1.bf16.msra.mxu0 0
      %513 = vmatprep.subr.bf16.mxu0 0
      %514 = vmatpush1.bf16.msra.mxu0 0
      %515 = vmatprep.subr.bf16.mxu0 0
      %516 = vmatpush1.bf16.msra.mxu0 0
      %517 = vmatprep.subr.bf16.mxu0 0
      %518 = vmatpush1.bf16.msra.mxu0 0
      %519 = vmatprep.subr.bf16.mxu0 0
      %520 = vmatpush1.bf16.msra.mxu0 0
      %521 = vmatprep.subr.bf16.mxu0 0
      %522 = vmatpush1.bf16.msra.mxu0 0
      %523 = vmatprep.subr.bf16.mxu0 0
      %524 = vmatpush1.bf16.msra.mxu0 0
      %525 = vmatprep.subr.bf16.mxu0 0
      %526 = vmatpush1.bf16.msra.mxu0 0
      %527 = vmatprep.subr.bf16.mxu0 0
      %528 = vmatpush1.bf16.msra.mxu0 0
      %529 = vmatprep.subr.bf16.mxu0 0
      %530 = vmatpush1.bf16.msra.mxu0 0
      %531 = vmatprep.subr.bf16.mxu0 0
      %532 = vmatpush1.bf16.msra.mxu0 0
      %533 = vmatprep.mubr.bf16.mxu0 0
      %534 = vmatmul.mubr.bf16.gmra.mrb[0].mxu0 %v456
      %v535 = vpop.f32.mrb[0].mxu0
      %v536 = vadd.f32 0.0, %v535
      %v537 = vpop.f32.mrb[0].mxu0
      %v538 = vpop.f32.mrb[0].mxu0
      %v539 = vadd.f32 0.0, %v538
      %v540 = vpop.f32.mrb[0].mxu0
      %541 = vdwg.mxu0
      %v542 = vpack.c.bf16 %v497, %v493
      %v543 = vpack.c.bf16 %v499, %v495
      %v544 = vpack.c.bf16 %v539, %v536
      %v545 = vld [vmem:[%s357] sm:$0xff]
      %v546 = vld [vmem:[%s357 + $0x8] sm:$0xf]
      %v547 = vld [vmem:[%s357 + $0xc] sm:$0xff]
      %v548 = vld [vmem:[%s357 + $0x14] sm:$0xf]
      %s549 = scalar_lea.vmem %s350, 8
      %v550 = vld [vmem:[%s549] sm:$0xf]
      %v551 = vld [vmem:[%s549 + $0x4] sm:$0xf]
      %v554 = vunpack.c.l.b16 %v550
      %v555 = vunpack.c.l.b16 %v551
      %v556 = vpack.c.b16 %v555, %v554
      %v558 = vsel %vm454, %v556, 0
      %560 = vmatprep.subr.bf16.mxu0 %v431
      %561 = vmatpush1.bf16.msra.mxu0 %v430
      %562 = vmatprep.subr.bf16.mxu0 %v434
      %563 = vmatpush1.bf16.msra.mxu0 %v433
      %564 = vmatprep.subr.bf16.mxu0 %v437
      %565 = vmatpush1.bf16.msra.mxu0 %v436
      %566 = vmatprep.subr.bf16.mxu0 %v440
      %567 = vmatpush1.bf16.msra.mxu0 %v439
      %568 = vmatprep.subr.bf16.mxu0 0
      %569 = vmatpush1.bf16.msra.mxu0 0
      %570 = vmatprep.subr.bf16.mxu0 0
      %571 = vmatpush1.bf16.msra.mxu0 0
      %572 = vmatprep.subr.bf16.mxu0 0
      %573 = vmatpush1.bf16.msra.mxu0 0
      %574 = vmatprep.subr.bf16.mxu0 0
      %575 = vmatpush1.bf16.msra.mxu0 0
      %576 = vmatprep.subr.bf16.mxu0 0
      %577 = vmatpush1.bf16.msra.mxu0 0
      %578 = vmatprep.subr.bf16.mxu0 0
      %579 = vmatpush1.bf16.msra.mxu0 0
      %580 = vmatprep.subr.bf16.mxu0 0
      %581 = vmatpush1.bf16.msra.mxu0 0
      %582 = vmatprep.subr.bf16.mxu0 0
      %583 = vmatpush1.bf16.msra.mxu0 0
      %584 = vmatprep.subr.bf16.mxu0 0
      %585 = vmatpush1.bf16.msra.mxu0 0
      %586 = vmatprep.subr.bf16.mxu0 0
      %587 = vmatpush1.bf16.msra.mxu0 0
      %588 = vmatprep.subr.bf16.mxu0 0
      %589 = vmatpush1.bf16.msra.mxu0 0
      %590 = vmatprep.subr.bf16.mxu0 0
      %591 = vmatpush1.bf16.msra.mxu0 0
      %592 = vmatprep.mubr.bf16.mxu0 0
      %593 = vmatmul.mubr.bf16.gmra.mrb[0].mxu0 %v558
      %v594 = vpop.f32.mrb[0].mxu0
      %v595 = vadd.f32 0.0, %v594
      %v596 = vpop.f32.mrb[0].mxu0
      %v597 = vadd.f32 0.0, %v596
      %v598 = vpop.f32.mrb[0].mxu0
      %v599 = vadd.f32 0.0, %v598
      %v600 = vpop.f32.mrb[0].mxu0
      %v601 = vadd.f32 0.0, %v600
      %602 = vdwg.mxu0
      %603 = vmatprep.subr.bf16.mxu0 0
      %604 = vmatpush1.bf16.msra.mxu0 %v432
      %605 = vmatprep.subr.bf16.mxu0 0
      %606 = vmatpush1.bf16.msra.mxu0 %v435
      %607 = vmatprep.subr.bf16.mxu0 0
      %608 = vmatpush1.bf16.msra.mxu0 %v438
      %609 = vmatprep.subr.bf16.mxu0 0
      %610 = vmatpush1.bf16.msra.mxu0 %v441
      %611 = vmatprep.subr.bf16.mxu0 0
      %612 = vmatpush1.bf16.msra.mxu0 0
      %613 = vmatprep.subr.bf16.mxu0 0
      %614 = vmatpush1.bf16.msra.mxu0 0
      %615 = vmatprep.subr.bf16.mxu0 0
      %616 = vmatpush1.bf16.msra.mxu0 0
      %617 = vmatprep.subr.bf16.mxu0 0
      %618 = vmatpush1.bf16.msra.mxu0 0
      %619 = vmatprep.subr.bf16.mxu0 0
      %620 = vmatpush1.bf16.msra.mxu0 0
      %621 = vmatprep.subr.bf16.mxu0 0
      %622 = vmatpush1.bf16.msra.mxu0 0
      %623 = vmatprep.subr.bf16.mxu0 0
      %624 = vmatpush1.bf16.msra.mxu0 0
      %625 = vmatprep.subr.bf16.mxu0 0
      %626 = vmatpush1.bf16.msra.mxu0 0
      %627 = vmatprep.subr.bf16.mxu0 0
      %628 = vmatpush1.bf16.msra.mxu0 0
      %629 = vmatprep.subr.bf16.mxu0 0
      %630 = vmatpush1.bf16.msra.mxu0 0
      %631 = vmatprep.subr.bf16.mxu0 0
      %632 = vmatpush1.bf16.msra.mxu0 0
      %633 = vmatprep.subr.bf16.mxu0 0
      %634 = vmatpush1.bf16.msra.mxu0 0
      %635 = vmatprep.mubr.bf16.mxu0 0
      %636 = vmatmul.mubr.bf16.gmra.mrb[0].mxu0 %v558
      %v637 = vpop.f32.mrb[0].mxu0
      %v638 = vadd.f32 0.0, %v637
      %v639 = vpop.f32.mrb[0].mxu0
      %v640 = vpop.f32.mrb[0].mxu0
      %v641 = vadd.f32 0.0, %v640
      %v642 = vpop.f32.mrb[0].mxu0
      %643 = vdwg.mxu0
      %v644 = vpack.c.bf16 %v599, %v595
      %v645 = vpack.c.bf16 %v601, %v597
      %v646 = vpack.c.bf16 %v641, %v638
      %s647 = scalar_lea.vmem %s357, 24
      %v648 = vld [vmem:[%s647] sm:$0xff]
      %v649 = vld [vmem:[%s647 + $0x8] sm:$0xf]
      %v650 = vld [vmem:[%s647 + $0xc] sm:$0xff]
      %v651 = vld [vmem:[%s647 + $0x14] sm:$0xf]
      %v652 = vld [vmem:[%s4] sm:$0xff]
      %v653 = vld [vmem:[%s4 + $0x8] sm:$0xff]
      %657 = vrot.lane.b32.xlu0 %v644, 68
      %v658 = vpop.permute.xlu0 %657
      %659 = vrot.lane.b32.xlu0 %v645, 68
      %v660 = vpop.permute.xlu0 %659
      %661 = vrot.lane.b32.xlu0 %v646, 68
      %v662 = vpop.permute.xlu0 %661
      %vm663 = vcmask 556032
      %v664 = vsel %vm663, %v658, %v660
      %v665 = vsel %vm663, %v660, %v662
      %vm669 = vcmask 556032
      %v672 = vsel %vm669, %v544, %v658
      %677 = vrot.lane.b32.xlu0 %v542, 127
      %v678 = vpop.permute.xlu0 %677
      %679 = vrot.lane.b32.xlu0 %v543, 127
      %v680 = vpop.permute.xlu0 %679
      %681 = vrot.lane.b32.xlu0 %v544, 127
      %v682 = vpop.permute.xlu0 %681
      %vm683 = vcmask 1039360
      %v684 = vsel %vm683, %v678, %v680
      %v685 = vsel %vm683, %v680, %v682
      %688 = vrot.lane.b32.xlu0 %v644, 67
      %v689 = vpop.permute.xlu0 %688
      %690 = vrot.lane.b32.xlu0 %v645, 67
      %v691 = vpop.permute.xlu0 %690
      %692 = vrot.lane.b32.xlu0 %v646, 67
      %v693 = vpop.permute.xlu0 %692
      %vm694 = vcmask 547840
      %v695 = vsel %vm694, %v689, %v691
      %v696 = vsel %vm694, %v691, %v693
      %v702 = vsel %vm669, %v682, %v689
      %704 = vrot.lane.b32.xlu0 %v542, 126
      %v705 = vpop.permute.xlu0 %704
      %706 = vrot.lane.b32.xlu0 %v543, 126
      %v707 = vpop.permute.xlu0 %706
      %708 = vrot.lane.b32.xlu0 %v544, 126
      %v709 = vpop.permute.xlu0 %708
      %vm710 = vcmask 1031168
      %v711 = vsel %vm710, %v705, %v707
      %v712 = vsel %vm710, %v707, %v709
      %715 = vrot.lane.b32.xlu0 %v644, 66
      %v716 = vpop.permute.xlu0 %715
      %717 = vrot.lane.b32.xlu0 %v645, 66
      %v718 = vpop.permute.xlu0 %717
      %719 = vrot.lane.b32.xlu0 %v646, 66
      %v720 = vpop.permute.xlu0 %719
      %vm721 = vcmask 539648
      %v722 = vsel %vm721, %v716, %v718
      %v723 = vsel %vm721, %v718, %v720
      %v729 = vsel %vm669, %v709, %v716
      %731 = vrot.lane.b32.xlu0 %v542, 110
      %v732 = vpop.permute.xlu0 %731
      %733 = vrot.lane.b32.xlu0 %v543, 110
      %v734 = vpop.permute.xlu0 %733
      %735 = vrot.lane.b32.xlu0 %v544, 110
      %v736 = vpop.permute.xlu0 %735
      %vm737 = vcmask 900096
      %v738 = vsel %vm737, %v732, %v734
      %v739 = vsel %vm737, %v734, %v736
      %742 = vrot.lane.b32.xlu0 %v644, 50
      %v743 = vpop.permute.xlu0 %742
      %744 = vrot.lane.b32.xlu0 %v645, 50
      %v745 = vpop.permute.xlu0 %744
      %746 = vrot.lane.b32.xlu0 %v646, 50
      %v747 = vpop.permute.xlu0 %746
      %vm748 = vcmask 408576
      %v749 = vsel %vm748, %v743, %v745
      %v750 = vsel %vm748, %v745, %v747
      %v756 = vsel %vm669, %v736, %v743
      %758 = vrot.lane.b32.xlu0 %v542, 109
      %v759 = vpop.permute.xlu0 %758
      %760 = vrot.lane.b32.xlu0 %v543, 109
      %v761 = vpop.permute.xlu0 %760
      %762 = vrot.lane.b32.xlu0 %v544, 109
      %v763 = vpop.permute.xlu0 %762
      %vm764 = vcmask 891904
      %v765 = vsel %vm764, %v759, %v761
      %v766 = vsel %vm764, %v761, %v763
      %769 = vrot.lane.b32.xlu0 %v644, 49
      %v770 = vpop.permute.xlu0 %769
      %771 = vrot.lane.b32.xlu0 %v645, 49
      %v772 = vpop.permute.xlu0 %771
      %773 = vrot.lane.b32.xlu0 %v646, 49
      %v774 = vpop.permute.xlu0 %773
      %vm775 = vcmask 400384
      %v776 = vsel %vm775, %v770, %v772
      %v777 = vsel %vm775, %v772, %v774
      %v783 = vsel %vm669, %v763, %v770
      %785 = vrot.lane.b32.xlu0 %v542, 108
      %v786 = vpop.permute.xlu0 %785
      %787 = vrot.lane.b32.xlu0 %v543, 108
      %v788 = vpop.permute.xlu0 %787
      %789 = vrot.lane.b32.xlu0 %v544, 108
      %v790 = vpop.permute.xlu0 %789
      %vm791 = vcmask 883712
      %v792 = vsel %vm791, %v786, %v788
      %v793 = vsel %vm791, %v788, %v790
      %796 = vrot.lane.b32.xlu0 %v644, 48
      %v797 = vpop.permute.xlu0 %796
      %798 = vrot.lane.b32.xlu0 %v645, 48
      %v799 = vpop.permute.xlu0 %798
      %800 = vrot.lane.b32.xlu0 %v646, 48
      %v801 = vpop.permute.xlu0 %800
      %vm802 = vcmask 392192
      %v803 = vsel %vm802, %v797, %v799
      %v804 = vsel %vm802, %v799, %v801
      %v810 = vsel %vm669, %v790, %v797
      %812 = vrot.lane.b32.xlu0 %v542, 92
      %v813 = vpop.permute.xlu0 %812
      %814 = vrot.lane.b32.xlu0 %v543, 92
      %v815 = vpop.permute.xlu0 %814
      %816 = vrot.lane.b32.xlu0 %v544, 92
      %v817 = vpop.permute.xlu0 %816
      %vm818 = vcmask 752640
      %v819 = vsel %vm818, %v813, %v815
      %v820 = vsel %vm818, %v815, %v817
      %823 = vrot.lane.b32.xlu0 %v644, 32
      %v824 = vpop.permute.xlu0 %823
      %825 = vrot.lane.b32.xlu0 %v645, 32
      %v826 = vpop.permute.xlu0 %825
      %827 = vrot.lane.b32.xlu0 %v646, 32
      %v828 = vpop.permute.xlu0 %827
      %vm829 = vcmask 261120
      %v830 = vsel %vm829, %v824, %v826
      %v831 = vsel %vm829, %v826, %v828
      %v837 = vsel %vm669, %v817, %v824
      %839 = vrot.lane.b32.xlu0 %v542, 91
      %v840 = vpop.permute.xlu0 %839
      %841 = vrot.lane.b32.xlu0 %v543, 91
      %v842 = vpop.permute.xlu0 %841
      %843 = vrot.lane.b32.xlu0 %v544, 91
      %v844 = vpop.permute.xlu0 %843
      %vm845 = vcmask 744448
      %v846 = vsel %vm845, %v840, %v842
      %v847 = vsel %vm845, %v842, %v844
      %850 = vrot.lane.b32.xlu0 %v644, 31
      %v851 = vpop.permute.xlu0 %850
      %852 = vrot.lane.b32.xlu0 %v645, 31
      %v853 = vpop.permute.xlu0 %852
      %854 = vrot.lane.b32.xlu0 %v646, 31
      %v855 = vpop.permute.xlu0 %854
      %vm856 = vcmask 252928
      %v857 = vsel %vm856, %v851, %v853
      %v858 = vsel %vm856, %v853, %v855
      %v864 = vsel %vm669, %v844, %v851
      %866 = vrot.lane.b32.xlu0 %v542, 90
      %v867 = vpop.permute.xlu0 %866
      %868 = vrot.lane.b32.xlu0 %v543, 90
      %v869 = vpop.permute.xlu0 %868
      %870 = vrot.lane.b32.xlu0 %v544, 90
      %v871 = vpop.permute.xlu0 %870
      %vm872 = vcmask 736256
      %v873 = vsel %vm872, %v867, %v869
      %v874 = vsel %vm872, %v869, %v871
      %877 = vrot.lane.b32.xlu0 %v644, 30
      %v878 = vpop.permute.xlu0 %877
      %879 = vrot.lane.b32.xlu0 %v645, 30
      %v880 = vpop.permute.xlu0 %879
      %881 = vrot.lane.b32.xlu0 %v646, 30
      %v882 = vpop.permute.xlu0 %881
      %vm883 = vcmask 244736
      %v884 = vsel %vm883, %v878, %v880
      %v885 = vsel %vm883, %v880, %v882
      %v891 = vsel %vm669, %v871, %v878
      %v893 = vld [vmem:[%s5] sm:$0xff]
      %v894 = vld [vmem:[%s5 + $0x8] sm:$0xff]
      %v899 = vunpack.c.l.b16 %v545
      %v900 = vunpack.c.h.b16 %v545
      %v901 = vunpack.c.l.b16 %v546
      %v902 = vunpack.c.l.b16 %v547
      %v903 = vunpack.c.h.b16 %v547
      %v904 = vunpack.c.l.b16 %v548
      %v905 = vpack.c.b16 %v902, %v899
      %v906 = vpack.c.b16 %v903, %v900
      %v907 = vpack.c.b16 %v904, %v901
      %v914 = vunpack.c.l.b16 %v648
      %v915 = vunpack.c.h.b16 %v648
      %v916 = vunpack.c.l.b16 %v649
      %v917 = vunpack.c.l.b16 %v650
      %v918 = vunpack.c.h.b16 %v650
      %v919 = vunpack.c.l.b16 %v651
      %v920 = vpack.c.b16 %v917, %v914
      %v921 = vpack.c.b16 %v918, %v915
      %v922 = vpack.c.b16 %v919, %v916
      %923 = vrot.lane.b32.xlu0 %v920, 68
      %v924 = vpop.permute.xlu0 %923
      %925 = vrot.lane.b32.xlu0 %v921, 68
      %v926 = vpop.permute.xlu0 %925
      %927 = vrot.lane.b32.xlu0 %v922, 68
      %v928 = vpop.permute.xlu0 %927
      %v929 = vsel %vm663, %v924, %v926
      %v930 = vsel %vm663, %v926, %v928
      %v936 = vsel %vm669, %v907, %v924
      %938 = vrot.lane.b32.xlu0 %v905, 127
      %v939 = vpop.permute.xlu0 %938
      %940 = vrot.lane.b32.xlu0 %v906, 127
      %v941 = vpop.permute.xlu0 %940
      %942 = vrot.lane.b32.xlu0 %v907, 127
      %v943 = vpop.permute.xlu0 %942
      %v944 = vsel %vm683, %v939, %v941
      %v945 = vsel %vm683, %v941, %v943
      %948 = vrot.lane.b32.xlu0 %v920, 67
      %v949 = vpop.permute.xlu0 %948
      %950 = vrot.lane.b32.xlu0 %v921, 67
      %v951 = vpop.permute.xlu0 %950
      %952 = vrot.lane.b32.xlu0 %v922, 67
      %v953 = vpop.permute.xlu0 %952
      %v954 = vsel %vm694, %v949, %v951
      %v955 = vsel %vm694, %v951, %v953
      %v961 = vsel %vm669, %v943, %v949
      %963 = vrot.lane.b32.xlu0 %v905, 126
      %v964 = vpop.permute.xlu0 %963
      %965 = vrot.lane.b32.xlu0 %v906, 126
      %v966 = vpop.permute.xlu0 %965
      %967 = vrot.lane.b32.xlu0 %v907, 126
      %v968 = vpop.permute.xlu0 %967
      %v969 = vsel %vm710, %v964, %v966
      %v970 = vsel %vm710, %v966, %v968
      %973 = vrot.lane.b32.xlu0 %v920, 66
      %v974 = vpop.permute.xlu0 %973
      %975 = vrot.lane.b32.xlu0 %v921, 66
      %v976 = vpop.permute.xlu0 %975
      %977 = vrot.lane.b32.xlu0 %v922, 66
      %v978 = vpop.permute.xlu0 %977
      %v979 = vsel %vm721, %v974, %v976
      %v980 = vsel %vm721, %v976, %v978
      %v986 = vsel %vm669, %v968, %v974
      %988 = vrot.lane.b32.xlu0 %v905, 110
      %v989 = vpop.permute.xlu0 %988
      %990 = vrot.lane.b32.xlu0 %v906, 110
      %v991 = vpop.permute.xlu0 %990
      %992 = vrot.lane.b32.xlu0 %v907, 110
      %v993 = vpop.permute.xlu0 %992
      %v994 = vsel %vm737, %v989, %v991
      %v995 = vsel %vm737, %v991, %v993
      %998 = vrot.lane.b32.xlu0 %v920, 50
      %v999 = vpop.permute.xlu0 %998
      %1000 = vrot.lane.b32.xlu0 %v921, 50
      %v1001 = vpop.permute.xlu0 %1000
      %1002 = vrot.lane.b32.xlu0 %v922, 50
      %v1003 = vpop.permute.xlu0 %1002
      %v1004 = vsel %vm748, %v999, %v1001
      %v1005 = vsel %vm748, %v1001, %v1003
      %v1011 = vsel %vm669, %v993, %v999
      %1013 = vrot.lane.b32.xlu0 %v905, 109
      %v1014 = vpop.permute.xlu0 %1013
      %1015 = vrot.lane.b32.xlu0 %v906, 109
      %v1016 = vpop.permute.xlu0 %1015
      %1017 = vrot.lane.b32.xlu0 %v907, 109
      %v1018 = vpop.permute.xlu0 %1017
      %v1019 = vsel %vm764, %v1014, %v1016
      %v1020 = vsel %vm764, %v1016, %v1018
      %1023 = vrot.lane.b32.xlu0 %v920, 49
      %v1024 = vpop.permute.xlu0 %1023
      %1025 = vrot.lane.b32.xlu0 %v921, 49
      %v1026 = vpop.permute.xlu0 %1025
      %1027 = vrot.lane.b32.xlu0 %v922, 49
      %v1028 = vpop.permute.xlu0 %1027
      %v1029 = vsel %vm775, %v1024, %v1026
      %v1030 = vsel %vm775, %v1026, %v1028
      %v1036 = vsel %vm669, %v1018, %v1024
      %1038 = vrot.lane.b32.xlu0 %v905, 108
      %v1039 = vpop.permute.xlu0 %1038
      %1040 = vrot.lane.b32.xlu0 %v906, 108
      %v1041 = vpop.permute.xlu0 %1040
      %1042 = vrot.lane.b32.xlu0 %v907, 108
      %v1043 = vpop.permute.xlu0 %1042
      %v1044 = vsel %vm791, %v1039, %v1041
      %v1045 = vsel %vm791, %v1041, %v1043
      %1048 = vrot.lane.b32.xlu0 %v920, 48
      %v1049 = vpop.permute.xlu0 %1048
      %1050 = vrot.lane.b32.xlu0 %v921, 48
      %v1051 = vpop.permute.xlu0 %1050
      %1052 = vrot.lane.b32.xlu0 %v922, 48
      %v1053 = vpop.permute.xlu0 %1052
      %v1054 = vsel %vm802, %v1049, %v1051
      %v1055 = vsel %vm802, %v1051, %v1053
      %v1061 = vsel %vm669, %v1043, %v1049
      %1063 = vrot.lane.b32.xlu0 %v905, 92
      %v1064 = vpop.permute.xlu0 %1063
      %1065 = vrot.lane.b32.xlu0 %v906, 92
      %v1066 = vpop.permute.xlu0 %1065
      %1067 = vrot.lane.b32.xlu0 %v907, 92
      %v1068 = vpop.permute.xlu0 %1067
      %v1069 = vsel %vm818, %v1064, %v1066
      %v1070 = vsel %vm818, %v1066, %v1068
      %1073 = vrot.lane.b32.xlu0 %v920, 32
      %v1074 = vpop.permute.xlu0 %1073
      %1075 = vrot.lane.b32.xlu0 %v921, 32
      %v1076 = vpop.permute.xlu0 %1075
      %1077 = vrot.lane.b32.xlu0 %v922, 32
      %v1078 = vpop.permute.xlu0 %1077
      %v1079 = vsel %vm829, %v1074, %v1076
      %v1080 = vsel %vm829, %v1076, %v1078
      %v1086 = vsel %vm669, %v1068, %v1074
      %1088 = vrot.lane.b32.xlu0 %v905, 91
      %v1089 = vpop.permute.xlu0 %1088
      %1090 = vrot.lane.b32.xlu0 %v906, 91
      %v1091 = vpop.permute.xlu0 %1090
      %1092 = vrot.lane.b32.xlu0 %v907, 91
      %v1093 = vpop.permute.xlu0 %1092
      %v1094 = vsel %vm845, %v1089, %v1091
      %v1095 = vsel %vm845, %v1091, %v1093
      %1098 = vrot.lane.b32.xlu0 %v920, 31
      %v1099 = vpop.permute.xlu0 %1098
      %1100 = vrot.lane.b32.xlu0 %v921, 31
      %v1101 = vpop.permute.xlu0 %1100
      %1102 = vrot.lane.b32.xlu0 %v922, 31
      %v1103 = vpop.permute.xlu0 %1102
      %v1104 = vsel %vm856, %v1099, %v1101
      %v1105 = vsel %vm856, %v1101, %v1103
      %v1111 = vsel %vm669, %v1093, %v1099
      %1113 = vrot.lane.b32.xlu0 %v905, 90
      %v1114 = vpop.permute.xlu0 %1113
      %1115 = vrot.lane.b32.xlu0 %v906, 90
      %v1116 = vpop.permute.xlu0 %1115
      %1117 = vrot.lane.b32.xlu0 %v907, 90
      %v1118 = vpop.permute.xlu0 %1117
      %v1119 = vsel %vm872, %v1114, %v1116
      %v1120 = vsel %vm872, %v1116, %v1118
      %1123 = vrot.lane.b32.xlu0 %v920, 30
      %v1124 = vpop.permute.xlu0 %1123
      %1125 = vrot.lane.b32.xlu0 %v921, 30
      %v1126 = vpop.permute.xlu0 %1125
      %1127 = vrot.lane.b32.xlu0 %v922, 30
      %v1128 = vpop.permute.xlu0 %1127
      %v1129 = vsel %vm883, %v1124, %v1126
      %v1130 = vsel %vm883, %v1126, %v1128
      %v1136 = vsel %vm669, %v1118, %v1124
      %v1140 = vunpack.c.l.b16 %v893
      %v1141 = vunpack.c.h.b16 %v893
      %v1142 = vunpack.c.l.b16 %v894
      %v1143 = vunpack.c.h.b16 %v894
      %v1144 = vpack.c.b16 %v1142, %v1140
      %v1145 = vpack.c.b16 %v1143, %v1141
      %vm1147 = vcmask 130048
      %v1149 = vsel %vm1147, %v1145, 0
      %1151 = vmatprep.subr.bf16.mxu0 %v906
      %1152 = vmatpush1.bf16.msra.mxu0 %v905
      %1153 = vmatprep.subr.bf16.mxu0 %v945
      %1154 = vmatpush1.bf16.msra.mxu0 %v944
      %1155 = vmatprep.subr.bf16.mxu0 %v970
      %1156 = vmatpush1.bf16.msra.mxu0 %v969
      %1157 = vmatprep.subr.bf16.mxu0 %v995
      %1158 = vmatpush1.bf16.msra.mxu0 %v994
      %1159 = vmatprep.subr.bf16.mxu0 %v1020
      %1160 = vmatpush1.bf16.msra.mxu0 %v1019
      %1161 = vmatprep.subr.bf16.mxu0 %v1045
      %1162 = vmatpush1.bf16.msra.mxu0 %v1044
      %1163 = vmatprep.subr.bf16.mxu0 %v1070
      %1164 = vmatpush1.bf16.msra.mxu0 %v1069
      %1165 = vmatprep.subr.bf16.mxu0 %v1095
      %1166 = vmatpush1.bf16.msra.mxu0 %v1094
      %1167 = vmatprep.subr.bf16.mxu0 %v1120
      %1168 = vmatpush1.bf16.msra.mxu0 %v1119
      %1169 = vmatprep.subr.bf16.mxu0 0
      %1170 = vmatpush1.bf16.msra.mxu0 0
      %1171 = vmatprep.subr.bf16.mxu0 0
      %1172 = vmatpush1.bf16.msra.mxu0 0
      %1173 = vmatprep.subr.bf16.mxu0 0
      %1174 = vmatpush1.bf16.msra.mxu0 0
      %1175 = vmatprep.subr.bf16.mxu0 0
      %1176 = vmatpush1.bf16.msra.mxu0 0
      %1177 = vmatprep.subr.bf16.mxu0 0
      %1178 = vmatpush1.bf16.msra.mxu0 0
      %1179 = vmatprep.subr.bf16.mxu0 0
      %1180 = vmatpush1.bf16.msra.mxu0 0
      %1181 = vmatprep.subr.bf16.mxu0 0
      %1182 = vmatpush1.bf16.msra.mxu0 0
      %1183 = vmatprep.mubr.bf16.mxu0 %v1149
      %1184 = vmatmul.mubr.bf16.gmra.mrb[0].mxu0 %v1144
      %v1185 = vpop.f32.mrb[0].mxu0
      %v1186 = vadd.f32 0.0, %v1185
      %v1187 = vpop.f32.mrb[0].mxu0
      %v1188 = vadd.f32 0.0, %v1187
      %v1189 = vpop.f32.mrb[0].mxu0
      %v1190 = vadd.f32 0.0, %v1189
      %v1191 = vpop.f32.mrb[0].mxu0
      %v1192 = vadd.f32 0.0, %v1191
      %1193 = vdwg.mxu0
      %1194 = vmatprep.subr.bf16.mxu0 %v929
      %1195 = vmatpush1.bf16.msra.mxu0 %v936
      %1196 = vmatprep.subr.bf16.mxu0 %v954
      %1197 = vmatpush1.bf16.msra.mxu0 %v961
      %1198 = vmatprep.subr.bf16.mxu0 %v979
      %1199 = vmatpush1.bf16.msra.mxu0 %v986
      %1200 = vmatprep.subr.bf16.mxu0 %v1004
      %1201 = vmatpush1.bf16.msra.mxu0 %v1011
      %1202 = vmatprep.subr.bf16.mxu0 %v1029
      %1203 = vmatpush1.bf16.msra.mxu0 %v1036
      %1204 = vmatprep.subr.bf16.mxu0 %v1054
      %1205 = vmatpush1.bf16.msra.mxu0 %v1061
      %1206 = vmatprep.subr.bf16.mxu0 %v1079
      %1207 = vmatpush1.bf16.msra.mxu0 %v1086
      %1208 = vmatprep.subr.bf16.mxu0 %v1104
      %1209 = vmatpush1.bf16.msra.mxu0 %v1111
      %1210 = vmatprep.subr.bf16.mxu0 %v1129
      %1211 = vmatpush1.bf16.msra.mxu0 %v1136
      %1212 = vmatprep.subr.bf16.mxu0 0
      %1213 = vmatpush1.bf16.msra.mxu0 0
      %1214 = vmatprep.subr.bf16.mxu0 0
      %1215 = vmatpush1.bf16.msra.mxu0 0
      %1216 = vmatprep.subr.bf16.mxu0 0
      %1217 = vmatpush1.bf16.msra.mxu0 0
      %1218 = vmatprep.subr.bf16.mxu0 0
      %1219 = vmatpush1.bf16.msra.mxu0 0
      %1220 = vmatprep.subr.bf16.mxu0 0
      %1221 = vmatpush1.bf16.msra.mxu0 0
      %1222 = vmatprep.subr.bf16.mxu0 0
      %1223 = vmatpush1.bf16.msra.mxu0 0
      %1224 = vmatprep.subr.bf16.mxu0 0
      %1225 = vmatpush1.bf16.msra.mxu0 0
      %1226 = vmatprep.mubr.bf16.mxu0 %v1149
      %1227 = vmatmul.mubr.bf16.gmra.mrb[0].mxu0 %v1144
      %v1228 = vpop.f32.mrb[0].mxu0
      %v1229 = vadd.f32 0.0, %v1228
      %v1230 = vpop.f32.mrb[0].mxu0
      %v1231 = vadd.f32 0.0, %v1230
      %v1232 = vpop.f32.mrb[0].mxu0
      %v1233 = vadd.f32 0.0, %v1232
      %v1234 = vpop.f32.mrb[0].mxu0
      %v1235 = vadd.f32 0.0, %v1234
      %1236 = vdwg.mxu0
      %1237 = vmatprep.subr.bf16.mxu0 %v928
      %1238 = vmatpush1.bf16.msra.mxu0 %v930
      %1239 = vmatprep.subr.bf16.mxu0 %v953
      %1240 = vmatpush1.bf16.msra.mxu0 %v955
      %1241 = vmatprep.subr.bf16.mxu0 %v978
      %1242 = vmatpush1.bf16.msra.mxu0 %v980
      %1243 = vmatprep.subr.bf16.mxu0 %v1003
      %1244 = vmatpush1.bf16.msra.mxu0 %v1005
      %1245 = vmatprep.subr.bf16.mxu0 %v1028
      %1246 = vmatpush1.bf16.msra.mxu0 %v1030
      %1247 = vmatprep.subr.bf16.mxu0 %v1053
      %1248 = vmatpush1.bf16.msra.mxu0 %v1055
      %1249 = vmatprep.subr.bf16.mxu0 %v1078
      %1250 = vmatpush1.bf16.msra.mxu0 %v1080
      %1251 = vmatprep.subr.bf16.mxu0 %v1103
      %1252 = vmatpush1.bf16.msra.mxu0 %v1105
      %1253 = vmatprep.subr.bf16.mxu0 %v1128
      %1254 = vmatpush1.bf16.msra.mxu0 %v1130
      %1255 = vmatprep.subr.bf16.mxu0 0
      %1256 = vmatpush1.bf16.msra.mxu0 0
      %1257 = vmatprep.subr.bf16.mxu0 0
      %1258 = vmatpush1.bf16.msra.mxu0 0
      %1259 = vmatprep.subr.bf16.mxu0 0
      %1260 = vmatpush1.bf16.msra.mxu0 0
      %1261 = vmatprep.subr.bf16.mxu0 0
      %1262 = vmatpush1.bf16.msra.mxu0 0
      %1263 = vmatprep.subr.bf16.mxu0 0
      %1264 = vmatpush1.bf16.msra.mxu0 0
      %1265 = vmatprep.subr.bf16.mxu0 0
      %1266 = vmatpush1.bf16.msra.mxu0 0
      %1267 = vmatprep.subr.bf16.mxu0 0
      %1268 = vmatpush1.bf16.msra.mxu0 0
      %1269 = vmatprep.mubr.bf16.mxu0 %v1149
      %1270 = vmatmul.mubr.bf16.gmra.mrb[0].mxu0 %v1144
      %v1271 = vpop.f32.mrb[0].mxu0
      %v1272 = vadd.f32 0.0, %v1271
      %v1273 = vpop.f32.mrb[0].mxu0
      %v1274 = vadd.f32 0.0, %v1273
      %v1275 = vpop.f32.mrb[0].mxu0
      %v1276 = vadd.f32 0.0, %v1275
      %v1277 = vpop.f32.mrb[0].mxu0
      %v1278 = vadd.f32 0.0, %v1277
      %1279 = vdwg.mxu0
      %v1282 = vunpack.c.l.b16 %v652
      %v1283 = vunpack.c.h.b16 %v652
      %v1284 = vunpack.c.l.b16 %v653
      %v1285 = vunpack.c.h.b16 %v653
      %v1286 = vpack.c.b16 %v1284, %v1282
      %v1287 = vpack.c.b16 %v1285, %v1283
      %v1290 = vsel %vm1147, %v1287, 0
      %1292 = vmatprep.subr.bf16.mxu0 %v543
      %1293 = vmatpush1.bf16.msra.mxu0 %v542
      %1294 = vmatprep.subr.bf16.mxu0 %v685
      %1295 = vmatpush1.bf16.msra.mxu0 %v684
      %1296 = vmatprep.subr.bf16.mxu0 %v712
      %1297 = vmatpush1.bf16.msra.mxu0 %v711
      %1298 = vmatprep.subr.bf16.mxu0 %v739
      %1299 = vmatpush1.bf16.msra.mxu0 %v738
      %1300 = vmatprep.subr.bf16.mxu0 %v766
      %1301 = vmatpush1.bf16.msra.mxu0 %v765
      %1302 = vmatprep.subr.bf16.mxu0 %v793
      %1303 = vmatpush1.bf16.msra.mxu0 %v792
      %1304 = vmatprep.subr.bf16.mxu0 %v820
      %1305 = vmatpush1.bf16.msra.mxu0 %v819
      %1306 = vmatprep.subr.bf16.mxu0 %v847
      %1307 = vmatpush1.bf16.msra.mxu0 %v846
      %1308 = vmatprep.subr.bf16.mxu0 %v874
      %1309 = vmatpush1.bf16.msra.mxu0 %v873
      %1310 = vmatprep.subr.bf16.mxu0 0
      %1311 = vmatpush1.bf16.msra.mxu0 0
      %1312 = vmatprep.subr.bf16.mxu0 0
      %1313 = vmatpush1.bf16.msra.mxu0 0
      %1314 = vmatprep.subr.bf16.mxu0 0
      %1315 = vmatpush1.bf16.msra.mxu0 0
      %1316 = vmatprep.subr.bf16.mxu0 0
      %1317 = vmatpush1.bf16.msra.mxu0 0
      %1318 = vmatprep.subr.bf16.mxu0 0
      %1319 = vmatpush1.bf16.msra.mxu0 0
      %1320 = vmatprep.subr.bf16.mxu0 0
      %1321 = vmatpush1.bf16.msra.mxu0 0
      %1322 = vmatprep.subr.bf16.mxu0 0
      %1323 = vmatpush1.bf16.msra.mxu0 0
      %1324 = vmatprep.mubr.bf16.mxu0 %v1290
      %1325 = vmatmul.mubr.bf16.gmra.mrb[0].mxu0 %v1286
      %v1326 = vpop.f32.mrb[0].mxu0
      %v1327 = vadd.f32 %v1186, %v1326
      %v1328 = vpop.f32.mrb[0].mxu0
      %v1329 = vadd.f32 %v1188, %v1328
      %v1330 = vpop.f32.mrb[0].mxu0
      %v1331 = vadd.f32 %v1190, %v1330
      %v1332 = vpop.f32.mrb[0].mxu0
      %v1333 = vadd.f32 %v1192, %v1332
      %1334 = vdwg.mxu0
      %1335 = vmatprep.subr.bf16.mxu0 %v664
      %1336 = vmatpush1.bf16.msra.mxu0 %v672
      %1337 = vmatprep.subr.bf16.mxu0 %v695
      %1338 = vmatpush1.bf16.msra.mxu0 %v702
      %1339 = vmatprep.subr.bf16.mxu0 %v722
      %1340 = vmatpush1.bf16.msra.mxu0 %v729
      %1341 = vmatprep.subr.bf16.mxu0 %v749
      %1342 = vmatpush1.bf16.msra.mxu0 %v756
      %1343 = vmatprep.subr.bf16.mxu0 %v776
      %1344 = vmatpush1.bf16.msra.mxu0 %v783
      %1345 = vmatprep.subr.bf16.mxu0 %v803
      %1346 = vmatpush1.bf16.msra.mxu0 %v810
      %1347 = vmatprep.subr.bf16.mxu0 %v830
      %1348 = vmatpush1.bf16.msra.mxu0 %v837
      %1349 = vmatprep.subr.bf16.mxu0 %v857
      %1350 = vmatpush1.bf16.msra.mxu0 %v864
      %1351 = vmatprep.subr.bf16.mxu0 %v884
      %1352 = vmatpush1.bf16.msra.mxu0 %v891
      %1353 = vmatprep.subr.bf16.mxu0 0
      %1354 = vmatpush1.bf16.msra.mxu0 0
      %1355 = vmatprep.subr.bf16.mxu0 0
      %1356 = vmatpush1.bf16.msra.mxu0 0
      %1357 = vmatprep.subr.bf16.mxu0 0
      %1358 = vmatpush1.bf16.msra.mxu0 0
      %1359 = vmatprep.subr.bf16.mxu0 0
      %1360 = vmatpush1.bf16.msra.mxu0 0
      %1361 = vmatprep.subr.bf16.mxu0 0
      %1362 = vmatpush1.bf16.msra.mxu0 0
      %1363 = vmatprep.subr.bf16.mxu0 0
      %1364 = vmatpush1.bf16.msra.mxu0 0
      %1365 = vmatprep.subr.bf16.mxu0 0
      %1366 = vmatpush1.bf16.msra.mxu0 0
      %1367 = vmatprep.mubr.bf16.mxu0 %v1290
      %1368 = vmatmul.mubr.bf16.gmra.mrb[0].mxu0 %v1286
      %v1369 = vpop.f32.mrb[0].mxu0
      %v1370 = vadd.f32 %v1229, %v1369
      %v1371 = vpop.f32.mrb[0].mxu0
      %v1372 = vadd.f32 %v1231, %v1371
      %v1373 = vpop.f32.mrb[0].mxu0
      %v1374 = vadd.f32 %v1233, %v1373
      %v1375 = vpop.f32.mrb[0].mxu0
      %v1376 = vadd.f32 %v1235, %v1375
      %1377 = vdwg.mxu0
      %1378 = vmatprep.subr.bf16.mxu0 %v662
      %1379 = vmatpush1.bf16.msra.mxu0 %v665
      %1380 = vmatprep.subr.bf16.mxu0 %v693
      %1381 = vmatpush1.bf16.msra.mxu0 %v696
      %1382 = vmatprep.subr.bf16.mxu0 %v720
      %1383 = vmatpush1.bf16.msra.mxu0 %v723
      %1384 = vmatprep.subr.bf16.mxu0 %v747
      %1385 = vmatpush1.bf16.msra.mxu0 %v750
      %1386 = vmatprep.subr.bf16.mxu0 %v774
      %1387 = vmatpush1.bf16.msra.mxu0 %v777
      %1388 = vmatprep.subr.bf16.mxu0 %v801
      %1389 = vmatpush1.bf16.msra.mxu0 %v804
      %1390 = vmatprep.subr.bf16.mxu0 %v828
      %1391 = vmatpush1.bf16.msra.mxu0 %v831
      %1392 = vmatprep.subr.bf16.mxu0 %v855
      %1393 = vmatpush1.bf16.msra.mxu0 %v858
      %1394 = vmatprep.subr.bf16.mxu0 %v882
      %1395 = vmatpush1.bf16.msra.mxu0 %v885
      %1396 = vmatprep.subr.bf16.mxu0 0
      %1397 = vmatpush1.bf16.msra.mxu0 0
      %1398 = vmatprep.subr.bf16.mxu0 0
      %1399 = vmatpush1.bf16.msra.mxu0 0
      %1400 = vmatprep.subr.bf16.mxu0 0
      %1401 = vmatpush1.bf16.msra.mxu0 0
      %1402 = vmatprep.subr.bf16.mxu0 0
      %1403 = vmatpush1.bf16.msra.mxu0 0
      %1404 = vmatprep.subr.bf16.mxu0 0
      %1405 = vmatpush1.bf16.msra.mxu0 0
      %1406 = vmatprep.subr.bf16.mxu0 0
      %1407 = vmatpush1.bf16.msra.mxu0 0
      %1408 = vmatprep.subr.bf16.mxu0 0
      %1409 = vmatpush1.bf16.msra.mxu0 0
      %1410 = vmatprep.mubr.bf16.mxu0 %v1290
      %1411 = vmatmul.mubr.bf16.gmra.mrb[0].mxu0 %v1286
      %v1412 = vpop.f32.mrb[0].mxu0
      %v1413 = vadd.f32 %v1272, %v1412
      %v1414 = vpop.f32.mrb[0].mxu0
      %v1415 = vadd.f32 %v1274, %v1414
      %v1416 = vpop.f32.mrb[0].mxu0
      %v1417 = vadd.f32 %v1276, %v1416
      %v1418 = vpop.f32.mrb[0].mxu0
      %v1419 = vadd.f32 %v1278, %v1418
      %1420 = vdwg.mxu0
      %v1421 = vld [vmem:[%s6] sm:$0xff]
      %v1422 = vld [vmem:[%s6 + $0x8] sm:$0xff]
      %1424 = vset.pattern.permute.xlu0 0
      %1425 = vperm.xlu0 %1424, %v1421
      %v1426 = vpop.permute.xlu0 %1425
      %1429 = vset.pattern.permute.xlu0 0
      %1430 = vperm.xlu0 %1429, %v1422
      %v1431 = vpop.permute.xlu0 %1430
      %v1433 = vadd.f32 %v1327, %v1426
      %v1434 = vadd.f32 %v1329, %v1426
      %v1435 = vadd.f32 %v1370, %v1426
      %v1436 = vadd.f32 %v1372, %v1426
      %v1437 = vadd.f32 %v1413, %v1426
      %v1438 = vadd.f32 %v1415, %v1426
      %v1439 = vadd.f32 %v1331, %v1431
      %v1440 = vadd.f32 %v1333, %v1431
      %v1441 = vadd.f32 %v1374, %v1431
      %v1442 = vadd.f32 %v1376, %v1431
      %v1443 = vadd.f32 %v1417, %v1431
      %v1444 = vadd.f32 %v1419, %v1431
      %v1445 = vmax.f32 %v1433, 0.0
      %v1446 = vmax.f32 %v1434, 0.0
      %v1447 = vmax.f32 %v1435, 0.0
      %v1448 = vmax.f32 %v1436, 0.0
      %v1449 = vmax.f32 %v1437, 0.0
      %v1450 = vmax.f32 %v1438, 0.0
      %v1451 = vmax.f32 %v1439, 0.0
      %v1452 = vmax.f32 %v1440, 0.0
      %v1453 = vmax.f32 %v1441, 0.0
      %v1454 = vmax.f32 %v1442, 0.0
      %v1455 = vmax.f32 %v1443, 0.0
      %v1456 = vmax.f32 %v1444, 0.0
      %v1457 = vpack.c.bf16 %v1451, %v1445
      %v1458 = vpack.c.bf16 %v1452, %v1446
      %v1459 = vpack.c.bf16 %v1453, %v1447
      %v1460 = vpack.c.bf16 %v1454, %v1448
      %v1461 = vpack.c.bf16 %v1455, %v1449
      %v1462 = vpack.c.bf16 %v1456, %v1450
      %v1463 = vld [vmem:[%s3] sm:$0x7]
      %v1466 = vunpack.c.l.s4 1966171168
      %v1467 = vunpack.c.0.s8 %v1466
      %v1468 = vlaneseq
      %v1469 = vshrl.u32 %v1468, 7
      %v1470 = vsub.s32 %v1467, %v1469
      %v1471 = vrot.slane %v1463, %v1470
      %v1472 = vcombine.high %v1471, %v1471
      %v1474 = vunpack.c.l.s4 1966171168
      %v1475 = vunpack.c.0.s8 %v1474
      %v1476 = vlaneseq
      %v1477 = vshrl.u32 %v1476, 7
      %v1478 = vsub.s32 %v1475, %v1477
      %v1479 = vrot.slane %v1471, %v1478
      %v1481 = vunpack.c.l.s4 1966171168
      %v1482 = vunpack.c.0.s8 %v1481
      %v1483 = vlaneseq
      %v1484 = vshrl.u32 %v1483, 7
      %v1485 = vsub.s32 %v1482, %v1484
      %v1486 = vrot.slane %v1472, %v1485
      %v1487 = vcombine.high %v1479, %v1479
      %v1489 = vpack.i.b16 %v1479, %v1479
      %v1491 = vlaneseq
      %v1492 = vshrl.u32 %v1491, 7
      %v1493 = vsub.s32 0, %v1492
      %v1494 = vrot.slane %v1489, %v1493
      %v1496 = vpack.i.b16 %v1486, %v1486
      %v1498 = vlaneseq
      %v1499 = vshrl.u32 %v1498, 7
      %v1500 = vsub.s32 0, %v1499
      %v1501 = vrot.slane %v1496, %v1500
      %v1503 = vpack.i.b16 %v1487, %v1487
      %v1505 = vlaneseq
      %v1506 = vshrl.u32 %v1505, 7
      %v1507 = vsub.s32 0, %v1506
      %v1508 = vrot.slane %v1503, %v1507
      %v1509 = vmul.bf16 %v1457, %v1494
      %v1510 = vmul.bf16 %v1458, %v1501
      %v1511 = vmul.bf16 %v1459, %v1508
      %1515 = vrot.lane.b32.xlu0 %v1509, 19
      %v1516 = vpop.permute.xlu0 %1515
      %1517 = vrot.lane.b32.xlu0 %v1510, 19
      %v1518 = vpop.permute.xlu0 %1517
      %1519 = vrot.lane.b32.xlu0 %v1511, 19
      %v1520 = vpop.permute.xlu0 %1519
      %vm1521 = vcmask 154624
      %v1522 = vsel %vm1521, %v1516, %v1518
      %v1523 = vsel %vm1521, %v1518, %v1520
      %vm1525 = vcmask 154624
      %v1528 = vsel %vm1525, 0, %v1516
      %vm1530 = vcmask 711680
      %v1532 = vsel %vm1530, %v1523, 0
      %1536 = vrot.lane.b32.xlu0 %v1494, 68
      %v1537 = vpop.permute.xlu0 %1536
      %1538 = vrot.lane.b32.xlu0 %v1501, 68
      %v1539 = vpop.permute.xlu0 %1538
      %1540 = vrot.lane.b32.xlu0 %v1508, 68
      %v1541 = vpop.permute.xlu0 %1540
      %v1542 = vsel %vm663, %v1537, %v1539
      %v1543 = vsel %vm663, %v1539, %v1541
      %v1548 = vmul.bf16 %v1459, %v1537
      %v1549 = vmul.bf16 %v1460, %v1542
      %v1550 = vmul.bf16 %v1461, %v1543
      %v1551 = vmul.bf16 %v1462, %v1541
      %1556 = vrot.lane.b32.xlu0 %v1548, 79
      %v1557 = vpop.permute.xlu0 %1556
      %1558 = vrot.lane.b32.xlu0 %v1549, 79
      %v1559 = vpop.permute.xlu0 %1558
      %1560 = vrot.lane.b32.xlu0 %v1550, 79
      %v1561 = vpop.permute.xlu0 %1560
      %1562 = vrot.lane.b32.xlu0 %v1551, 79
      %v1563 = vpop.permute.xlu0 %1562
      %vm1564 = vcmask 646144
      %v1565 = vsel %vm1564, %v1557, %v1559
      %v1566 = vsel %vm1564, %v1559, %v1561
      %v1567 = vsel %vm1564, %v1561, %v1563
      %v1569 = vsel %vm1525, 0, %v1565
      %v1571 = vsel %vm1530, %v1567, 0
      %v1572 = vld [vmem:[%s7] sm:$0xff]
      %v1573 = vld [vmem:[%s7 + $0x8] sm:$0xff]
      %1576 = vrot.lane.b32.xlu0 %v1569, 68
      %v1577 = vpop.permute.xlu0 %1576
      %1578 = vrot.lane.b32.xlu0 %v1566, 68
      %v1579 = vpop.permute.xlu0 %1578
      %1580 = vrot.lane.b32.xlu0 %v1571, 68
      %v1581 = vpop.permute.xlu0 %1580
      %v1582 = vsel %vm663, %v1577, %v1579
      %v1583 = vsel %vm663, %v1579, %v1581
      %v1588 = vsel %vm669, %v1532, %v1577
      %1592 = vrot.lane.b32.xlu0 %v1528, 127
      %v1593 = vpop.permute.xlu0 %1592
      %1594 = vrot.lane.b32.xlu0 %v1522, 127
      %v1595 = vpop.permute.xlu0 %1594
      %1596 = vrot.lane.b32.xlu0 %v1532, 127
      %v1597 = vpop.permute.xlu0 %1596
      %v1598 = vsel %vm683, %v1593, %v1595
      %v1599 = vsel %vm683, %v1595, %v1597
      %1602 = vrot.lane.b32.xlu0 %v1569, 67
      %v1603 = vpop.permute.xlu0 %1602
      %1604 = vrot.lane.b32.xlu0 %v1566, 67
      %v1605 = vpop.permute.xlu0 %1604
      %1606 = vrot.lane.b32.xlu0 %v1571, 67
      %v1607 = vpop.permute.xlu0 %1606
      %v1608 = vsel %vm694, %v1603, %v1605
      %v1609 = vsel %vm694, %v1605, %v1607
      %v1615 = vsel %vm669, %v1597, %v1603
      %1617 = vrot.lane.b32.xlu0 %v1528, 126
      %v1618 = vpop.permute.xlu0 %1617
      %1619 = vrot.lane.b32.xlu0 %v1522, 126
      %v1620 = vpop.permute.xlu0 %1619
      %1621 = vrot.lane.b32.xlu0 %v1532, 126
      %v1622 = vpop.permute.xlu0 %1621
      %v1623 = vsel %vm710, %v1618, %v1620
      %v1624 = vsel %vm710, %v1620, %v1622
      %1627 = vrot.lane.b32.xlu0 %v1569, 66
      %v1628 = vpop.permute.xlu0 %1627
      %1629 = vrot.lane.b32.xlu0 %v1566, 66
      %v1630 = vpop.permute.xlu0 %1629
      %1631 = vrot.lane.b32.xlu0 %v1571, 66
      %v1632 = vpop.permute.xlu0 %1631
      %v1633 = vsel %vm721, %v1628, %v1630
      %v1634 = vsel %vm721, %v1630, %v1632
      %v1640 = vsel %vm669, %v1622, %v1628
      %1642 = vrot.lane.b32.xlu0 %v1528, 110
      %v1643 = vpop.permute.xlu0 %1642
      %1644 = vrot.lane.b32.xlu0 %v1522, 110
      %v1645 = vpop.permute.xlu0 %1644
      %1646 = vrot.lane.b32.xlu0 %v1532, 110
      %v1647 = vpop.permute.xlu0 %1646
      %v1648 = vsel %vm737, %v1643, %v1645
      %v1649 = vsel %vm737, %v1645, %v1647
      %1652 = vrot.lane.b32.xlu0 %v1569, 50
      %v1653 = vpop.permute.xlu0 %1652
      %1654 = vrot.lane.b32.xlu0 %v1566, 50
      %v1655 = vpop.permute.xlu0 %1654
      %1656 = vrot.lane.b32.xlu0 %v1571, 50
      %v1657 = vpop.permute.xlu0 %1656
      %v1658 = vsel %vm748, %v1653, %v1655
      %v1659 = vsel %vm748, %v1655, %v1657
      %v1665 = vsel %vm669, %v1647, %v1653
      %1667 = vrot.lane.b32.xlu0 %v1528, 109
      %v1668 = vpop.permute.xlu0 %1667
      %1669 = vrot.lane.b32.xlu0 %v1522, 109
      %v1670 = vpop.permute.xlu0 %1669
      %1671 = vrot.lane.b32.xlu0 %v1532, 109
      %v1672 = vpop.permute.xlu0 %1671
      %v1673 = vsel %vm764, %v1668, %v1670
      %v1674 = vsel %vm764, %v1670, %v1672
      %1677 = vrot.lane.b32.xlu0 %v1569, 49
      %v1678 = vpop.permute.xlu0 %1677
      %1679 = vrot.lane.b32.xlu0 %v1566, 49
      %v1680 = vpop.permute.xlu0 %1679
      %1681 = vrot.lane.b32.xlu0 %v1571, 49
      %v1682 = vpop.permute.xlu0 %1681
      %v1683 = vsel %vm775, %v1678, %v1680
      %v1684 = vsel %vm775, %v1680, %v1682
      %v1690 = vsel %vm669, %v1672, %v1678
      %1692 = vrot.lane.b32.xlu0 %v1528, 108
      %v1693 = vpop.permute.xlu0 %1692
      %1694 = vrot.lane.b32.xlu0 %v1522, 108
      %v1695 = vpop.permute.xlu0 %1694
      %1696 = vrot.lane.b32.xlu0 %v1532, 108
      %v1697 = vpop.permute.xlu0 %1696
      %v1698 = vsel %vm791, %v1693, %v1695
      %v1699 = vsel %vm791, %v1695, %v1697
      %1702 = vrot.lane.b32.xlu0 %v1569, 48
      %v1703 = vpop.permute.xlu0 %1702
      %1704 = vrot.lane.b32.xlu0 %v1566, 48
      %v1705 = vpop.permute.xlu0 %1704
      %1706 = vrot.lane.b32.xlu0 %v1571, 48
      %v1707 = vpop.permute.xlu0 %1706
      %v1708 = vsel %vm802, %v1703, %v1705
      %v1709 = vsel %vm802, %v1705, %v1707
      %v1715 = vsel %vm669, %v1697, %v1703
      %1717 = vrot.lane.b32.xlu0 %v1528, 92
      %v1718 = vpop.permute.xlu0 %1717
      %1719 = vrot.lane.b32.xlu0 %v1522, 92
      %v1720 = vpop.permute.xlu0 %1719
      %1721 = vrot.lane.b32.xlu0 %v1532, 92
      %v1722 = vpop.permute.xlu0 %1721
      %v1723 = vsel %vm818, %v1718, %v1720
      %v1724 = vsel %vm818, %v1720, %v1722
      %1727 = vrot.lane.b32.xlu0 %v1569, 32
      %v1728 = vpop.permute.xlu0 %1727
      %1729 = vrot.lane.b32.xlu0 %v1566, 32
      %v1730 = vpop.permute.xlu0 %1729
      %1731 = vrot.lane.b32.xlu0 %v1571, 32
      %v1732 = vpop.permute.xlu0 %1731
      %v1733 = vsel %vm829, %v1728, %v1730
      %v1734 = vsel %vm829, %v1730, %v1732
      %v1740 = vsel %vm669, %v1722, %v1728
      %1742 = vrot.lane.b32.xlu0 %v1528, 91
      %v1743 = vpop.permute.xlu0 %1742
      %1744 = vrot.lane.b32.xlu0 %v1522, 91
      %v1745 = vpop.permute.xlu0 %1744
      %1746 = vrot.lane.b32.xlu0 %v1532, 91
      %v1747 = vpop.permute.xlu0 %1746
      %v1748 = vsel %vm845, %v1743, %v1745
      %v1749 = vsel %vm845, %v1745, %v1747
      %1752 = vrot.lane.b32.xlu0 %v1569, 31
      %v1753 = vpop.permute.xlu0 %1752
      %1754 = vrot.lane.b32.xlu0 %v1566, 31
      %v1755 = vpop.permute.xlu0 %1754
      %1756 = vrot.lane.b32.xlu0 %v1571, 31
      %v1757 = vpop.permute.xlu0 %1756
      %v1758 = vsel %vm856, %v1753, %v1755
      %v1759 = vsel %vm856, %v1755, %v1757
      %v1765 = vsel %vm669, %v1747, %v1753
      %1767 = vrot.lane.b32.xlu0 %v1528, 90
      %v1768 = vpop.permute.xlu0 %1767
      %1769 = vrot.lane.b32.xlu0 %v1522, 90
      %v1770 = vpop.permute.xlu0 %1769
      %1771 = vrot.lane.b32.xlu0 %v1532, 90
      %v1772 = vpop.permute.xlu0 %1771
      %v1773 = vsel %vm872, %v1768, %v1770
      %v1774 = vsel %vm872, %v1770, %v1772
      %1777 = vrot.lane.b32.xlu0 %v1569, 30
      %v1778 = vpop.permute.xlu0 %1777
      %1779 = vrot.lane.b32.xlu0 %v1566, 30
      %v1780 = vpop.permute.xlu0 %1779
      %1781 = vrot.lane.b32.xlu0 %v1571, 30
      %v1782 = vpop.permute.xlu0 %1781
      %v1783 = vsel %vm883, %v1778, %v1780
      %v1784 = vsel %vm883, %v1780, %v1782
      %v1790 = vsel %vm669, %v1772, %v1778
      %v1792 = vld [vmem:[%s8] sm:$0xff]
      %v1793 = vld [vmem:[%s8 + $0x8] sm:$0xff]
      %1795 = vset.pattern.permute.xlu0 0
      %1796 = vperm.xlu0 %1795, %v1792
      %v1797 = vpop.permute.xlu0 %1796
      %1800 = vset.pattern.permute.xlu0 0
      %1801 = vperm.xlu0 %1800, %v1793
      %v1802 = vpop.permute.xlu0 %1801
      %v1806 = vunpack.c.l.b16 %v1572
      %v1807 = vunpack.c.h.b16 %v1572
      %v1808 = vunpack.c.l.b16 %v1573
      %v1809 = vunpack.c.h.b16 %v1573
      %v1810 = vpack.c.b16 %v1808, %v1806
      %v1811 = vpack.c.b16 %v1809, %v1807
      %v1814 = vsel %vm1147, %v1811, 0
      %1816 = vmatprep.subr.bf16.mxu0 %v1522
      %1817 = vmatpush1.bf16.msra.mxu0 %v1528
      %1818 = vmatprep.subr.bf16.mxu0 %v1599
      %1819 = vmatpush1.bf16.msra.mxu0 %v1598
      %1820 = vmatprep.subr.bf16.mxu0 %v1624
      %1821 = vmatpush1.bf16.msra.mxu0 %v1623
      %1822 = vmatprep.subr.bf16.mxu0 %v1649
      %1823 = vmatpush1.bf16.msra.mxu0 %v1648
      %1824 = vmatprep.subr.bf16.mxu0 %v1674
      %1825 = vmatpush1.bf16.msra.mxu0 %v1673
      %1826 = vmatprep.subr.bf16.mxu0 %v1699
      %1827 = vmatpush1.bf16.msra.mxu0 %v1698
      %1828 = vmatprep.subr.bf16.mxu0 %v1724
      %1829 = vmatpush1.bf16.msra.mxu0 %v1723
      %1830 = vmatprep.subr.bf16.mxu0 %v1749
      %1831 = vmatpush1.bf16.msra.mxu0 %v1748
      %1832 = vmatprep.subr.bf16.mxu0 %v1774
      %1833 = vmatpush1.bf16.msra.mxu0 %v1773
      %1834 = vmatprep.subr.bf16.mxu0 0
      %1835 = vmatpush1.bf16.msra.mxu0 0
      %1836 = vmatprep.subr.bf16.mxu0 0
      %1837 = vmatpush1.bf16.msra.mxu0 0
      %1838 = vmatprep.subr.bf16.mxu0 0
      %1839 = vmatpush1.bf16.msra.mxu0 0
      %1840 = vmatprep.subr.bf16.mxu0 0
      %1841 = vmatpush1.bf16.msra.mxu0 0
      %1842 = vmatprep.subr.bf16.mxu0 0
      %1843 = vmatpush1.bf16.msra.mxu0 0
      %1844 = vmatprep.subr.bf16.mxu0 0
      %1845 = vmatpush1.bf16.msra.mxu0 0
      %1846 = vmatprep.subr.bf16.mxu0 0
      %1847 = vmatpush1.bf16.msra.mxu0 0
      %1848 = vmatprep.mubr.bf16.mxu0 %v1814
      %1849 = vmatmul.mubr.bf16.gmra.mrb[0].mxu0 %v1810
      %v1850 = vpop.f32.mrb[0].mxu0
      %v1851 = vadd.f32 %v1797, %v1850
      %v1852 = vpop.f32.mrb[0].mxu0
      %v1853 = vadd.f32 %v1797, %v1852
      %v1854 = vpop.f32.mrb[0].mxu0
      %v1855 = vadd.f32 %v1802, %v1854
      %v1856 = vpop.f32.mrb[0].mxu0
      %v1857 = vadd.f32 %v1802, %v1856
      %1858 = vdwg.mxu0
      %1859 = vmatprep.subr.bf16.mxu0 %v1582
      %1860 = vmatpush1.bf16.msra.mxu0 %v1588
      %1861 = vmatprep.subr.bf16.mxu0 %v1608
      %1862 = vmatpush1.bf16.msra.mxu0 %v1615
      %1863 = vmatprep.subr.bf16.mxu0 %v1633
      %1864 = vmatpush1.bf16.msra.mxu0 %v1640
      %1865 = vmatprep.subr.bf16.mxu0 %v1658
      %1866 = vmatpush1.bf16.msra.mxu0 %v1665
      %1867 = vmatprep.subr.bf16.mxu0 %v1683
      %1868 = vmatpush1.bf16.msra.mxu0 %v1690
      %1869 = vmatprep.subr.bf16.mxu0 %v1708
      %1870 = vmatpush1.bf16.msra.mxu0 %v1715
      %1871 = vmatprep.subr.bf16.mxu0 %v1733
      %1872 = vmatpush1.bf16.msra.mxu0 %v1740
      %1873 = vmatprep.subr.bf16.mxu0 %v1758
      %1874 = vmatpush1.bf16.msra.mxu0 %v1765
      %1875 = vmatprep.subr.bf16.mxu0 %v1783
      %1876 = vmatpush1.bf16.msra.mxu0 %v1790
      %1877 = vmatprep.subr.bf16.mxu0 0
      %1878 = vmatpush1.bf16.msra.mxu0 0
      %1879 = vmatprep.subr.bf16.mxu0 0
      %1880 = vmatpush1.bf16.msra.mxu0 0
      %1881 = vmatprep.subr.bf16.mxu0 0
      %1882 = vmatpush1.bf16.msra.mxu0 0
      %1883 = vmatprep.subr.bf16.mxu0 0
      %1884 = vmatpush1.bf16.msra.mxu0 0
      %1885 = vmatprep.subr.bf16.mxu0 0
      %1886 = vmatpush1.bf16.msra.mxu0 0
      %1887 = vmatprep.subr.bf16.mxu0 0
      %1888 = vmatpush1.bf16.msra.mxu0 0
      %1889 = vmatprep.subr.bf16.mxu0 0
      %1890 = vmatpush1.bf16.msra.mxu0 0
      %1891 = vmatprep.mubr.bf16.mxu0 %v1814
      %1892 = vmatmul.mubr.bf16.gmra.mrb[0].mxu0 %v1810
      %v1893 = vpop.f32.mrb[0].mxu0
      %v1894 = vadd.f32 %v1797, %v1893
      %v1895 = vpop.f32.mrb[0].mxu0
      %v1896 = vadd.f32 %v1797, %v1895
      %v1897 = vpop.f32.mrb[0].mxu0
      %v1898 = vadd.f32 %v1802, %v1897
      %v1899 = vpop.f32.mrb[0].mxu0
      %v1900 = vadd.f32 %v1802, %v1899
      %1901 = vdwg.mxu0
      %1902 = vmatprep.subr.bf16.mxu0 %v1581
      %1903 = vmatpush1.bf16.msra.mxu0 %v1583
      %1904 = vmatprep.subr.bf16.mxu0 %v1607
      %1905 = vmatpush1.bf16.msra.mxu0 %v1609
      %1906 = vmatprep.subr.bf16.mxu0 %v1632
      %1907 = vmatpush1.bf16.msra.mxu0 %v1634
      %1908 = vmatprep.subr.bf16.mxu0 %v1657
      %1909 = vmatpush1.bf16.msra.mxu0 %v1659
      %1910 = vmatprep.subr.bf16.mxu0 %v1682
      %1911 = vmatpush1.bf16.msra.mxu0 %v1684
      %1912 = vmatprep.subr.bf16.mxu0 %v1707
      %1913 = vmatpush1.bf16.msra.mxu0 %v1709
      %1914 = vmatprep.subr.bf16.mxu0 %v1732
      %1915 = vmatpush1.bf16.msra.mxu0 %v1734
      %1916 = vmatprep.subr.bf16.mxu0 %v1757
      %1917 = vmatpush1.bf16.msra.mxu0 %v1759
      %1918 = vmatprep.subr.bf16.mxu0 %v1782
      %1919 = vmatpush1.bf16.msra.mxu0 %v1784
      %1920 = vmatprep.subr.bf16.mxu0 0
      %1921 = vmatpush1.bf16.msra.mxu0 0
      %1922 = vmatprep.subr.bf16.mxu0 0
      %1923 = vmatpush1.bf16.msra.mxu0 0
      %1924 = vmatprep.subr.bf16.mxu0 0
      %1925 = vmatpush1.bf16.msra.mxu0 0
      %1926 = vmatprep.subr.bf16.mxu0 0
      %1927 = vmatpush1.bf16.msra.mxu0 0
      %1928 = vmatprep.subr.bf16.mxu0 0
      %1929 = vmatpush1.bf16.msra.mxu0 0
      %1930 = vmatprep.subr.bf16.mxu0 0
      %1931 = vmatpush1.bf16.msra.mxu0 0
      %1932 = vmatprep.subr.bf16.mxu0 0
      %1933 = vmatpush1.bf16.msra.mxu0 0
      %1934 = vmatprep.mubr.bf16.mxu0 %v1814
      %1935 = vmatmul.mubr.bf16.gmra.mrb[0].mxu0 %v1810
      %v1936 = vpop.f32.mrb[0].mxu0
      %v1937 = vadd.f32 %v1797, %v1936
      %v1938 = vpop.f32.mrb[0].mxu0
      %v1939 = vadd.f32 %v1797, %v1938
      %v1940 = vpop.f32.mrb[0].mxu0
      %v1941 = vadd.f32 %v1802, %v1940
      %v1942 = vpop.f32.mrb[0].mxu0
      %v1943 = vadd.f32 %v1802, %v1942
      %1944 = vdwg.mxu0
      %v1945 = vmax.f32 %v1851, 0.0
      %v1946 = vmax.f32 %v1853, 0.0
      %v1947 = vmax.f32 %v1894, 0.0
      %v1948 = vmax.f32 %v1896, 0.0
      %v1949 = vmax.f32 %v1937, 0.0
      %v1950 = vmax.f32 %v1939, 0.0
      %v1951 = vmax.f32 %v1855, 0.0
      %v1952 = vmax.f32 %v1857, 0.0
      %v1953 = vmax.f32 %v1898, 0.0
      %v1954 = vmax.f32 %v1900, 0.0
      %v1955 = vmax.f32 %v1941, 0.0
      %v1956 = vmax.f32 %v1943, 0.0
      %1957 = vst [vmem:[%s364] sm:$0xff] %v1945
      %1958 = vst [vmem:[%s364 + $0x8] sm:$0xff] %v1946
      %1959 = vst.msk [vmem:[%s364 + $0x10] sm:$0xff] %vm669, %v1947
      %1960 = vst [vmem:[%s364 + $0x18] sm:$0xff] %v1951
      %1961 = vst [vmem:[%s364 + $0x20] sm:$0xff] %v1952
      %1962 = vst.msk [vmem:[%s364 + $0x28] sm:$0xff] %vm669, %v1953
      %1971 = vrot.lane.b32.xlu0 %v1947, 60
      %v1972 = vpop.permute.xlu0 %1971
      %1973 = vrot.lane.b32.xlu0 %v1948, 60
      %v1974 = vpop.permute.xlu0 %1973
      %1975 = vrot.lane.b32.xlu0 %v1949, 60
      %v1976 = vpop.permute.xlu0 %1975
      %1977 = vrot.lane.b32.xlu0 %v1950, 60
      %v1978 = vpop.permute.xlu0 %1977
      %1979 = vrot.lane.b32.xlu0 %v1953, 60
      %v1980 = vpop.permute.xlu0 %1979
      %1981 = vrot.lane.b32.xlu0 %v1954, 60
      %v1982 = vpop.permute.xlu0 %1981
      %1983 = vrot.lane.b32.xlu0 %v1955, 60
      %v1984 = vpop.permute.xlu0 %1983
      %1985 = vrot.lane.b32.xlu0 %v1956, 60
      %v1986 = vpop.permute.xlu0 %1985
      %vm1987 = vcmask 490496
      %v1988 = vsel %vm1987, %v1972, %v1974
      %v1989 = vsel %vm1987, %v1974, %v1976
      %v1990 = vsel %vm1987, %v1976, %v1978
      %v1991 = vsel %vm1987, %v1980, %v1982
      %v1992 = vsel %vm1987, %v1982, %v1984
      %v1993 = vsel %vm1987, %v1984, %v1986
      %s2000 = scalar_lea.vmem %s364, 48
      %2001 = vst [vmem:[%s2000] sm:$0xff] %v1988
      %2002 = vst [vmem:[%s2000 + $0x8] sm:$0xff] %v1989
      %2003 = vst.msk [vmem:[%s2000 + $0x10] sm:$0xff] %vm669, %v1990
      %2004 = vst [vmem:[%s2000 + $0x18] sm:$0xff] %v1991
      %2005 = vst [vmem:[%s2000 + $0x20] sm:$0xff] %v1992
      %2006 = vst.msk [vmem:[%s2000 + $0x28] sm:$0xff] %vm669, %v1993
      %s2007 = smul.u32 2, %s20
      %p2008 = scmp.lt.s32.totalorder %s2007, 3
      %s2009 = scalar_select %p2008, %s2007, 3
      %s2010 = smul.addr %s2009, 6
      %s2011 = smul.addr %s2010, 8
      %s2012 = scalar_lea.vmem %s9, %s2011
      // Predicated region
      $region57: #{expanding_stack_forward.1} parent=55 // pred_check
        %p2013 = pneg %p237
      $region58: #{expanding_stack_forward.1} parent=55 // pred_check_branch
        %2015 = sbr.rel (%p2013) target = $region60
      $region59: #{expanding_stack_forward.1} parent=55 // pred_region
        %s2016 = smul.u32 2, %s20
      $region60: #{expanding_stack_forward.1} parent=55 // pred_fallthru
        _
    $region56: #{expanding_stack_forward.1} parent=5 // pred_fallthru
      _
    %p2017 = scmp.le.s32.totalorder 2, %s15
    // Predicated region
    $region61: #{expanding_stack_forward.1} parent=5 // pred_check
      %p2018 = pneg %p2017
    $region62: #{expanding_stack_forward.1} parent=5 // pred_check_branch
      %2020 = sbr.rel (%p2018) target = $region64
    $region63: #{expanding_stack_forward.1} parent=5 // pred_region
      %s2021 = ssub.s32 %s15, 2
      // Predicated region
      $region65: #{expanding_stack_forward.1} parent=63 // pred_check
        %p2022 = pneg %p243
      $region66: #{expanding_stack_forward.1} parent=63 // pred_check_branch
        %2024 = sbr.rel (%p2022) target = $region68
      $region67: #{expanding_stack_forward.1} parent=63 // pred_region
        %s2025 = smul.u32 2, %s21
        %p2026 = scmp.lt.s32.totalorder %s2025, 3
        %s2027 = scalar_select %p2026, %s2025, 3
        %s2028 = smul.addr %s2027, 6
        %s2029 = smul.addr %s2028, 8
        %s2030 = scalar_lea.vmem %s9, %s2029
      $region68: #{expanding_stack_forward.1} parent=63 // pred_fallthru
        _
    $region64: #{expanding_stack_forward.1} parent=5 // pred_fallthru
      _
  $region6: #{expanding_stack_forward.1} parent=0 // loop_footer
    %s19 = sadd.s32 1, %s15
  $region7: #{expanding_stack_forward.1} parent=0 // loop_footer_branch
    %14 = sbr.rel target = $region3
  $region8: #{expanding_stack_forward.1} parent=0 // loop_exit
    _

</llo_original>
